<compile_context>
chip_gen: v7x
topology: tpu7x:2x2x1
jax: 0.10.0
libtpu: 0.0.40
codegen_flags: <defaults>
</compile_context>

<pallas_src>
import functools

import jax
import jax.numpy as jnp
from jax.experimental import pallas as pl
from jax.experimental.pallas import tpu as pltpu

# Flip to jnp.bfloat16 on v6e/v7x for higher MXU throughput and halved weight
# DMA bytes (accumulation stays f32 via preferred_element_type). Default f32 to
# exactly match the PyTorch module's numerics.
MATMUL_INPUT_DTYPE = jnp.float32


def _round_up(x, m):
    return (x + m - 1) // m * m


def _choose_time_chunk(T, max_chunk=16):
    """Largest divisor of T that is <= max_chunk (time steps per grid step)."""
    for tc in range(min(T, max_chunk), 0, -1):
        if T % tc == 0:
            return tc
    return 1


# ----------------------------------------------------------------------------
# Kernel 1: input projection  x_proj = x @ W_ih + (b_ih + b_hh)
# Grid iterates over time chunks ("parallel"); each block is a well-shaped
# (Tc*B, D_in) x (D_in, 4H) MXU matmul with a lane-dense (.., 4H) output.
# ----------------------------------------------------------------------------
def _input_proj_kernel(x_ref, w_ref, b_ref, out_ref):
    x = x_ref[...].astype(MATMUL_INPUT_DTYPE)
    w = w_ref[...].astype(MATMUL_INPUT_DTYPE)
    out_ref[...] = (
        jnp.dot(x, w, preferred_element_type=jnp.float32) + b_ref[...]
    )


def input_projection(x_flat, w_ih, bias, T, B, tc):
    """x_flat: (T*B, D_in) time-major flat -> (T*B, 4H)."""
    TB, D = x_flat.shape
    G = w_ih.shape[1]  # 4*H
    rows = tc * B
    return pl.pallas_call(
        _input_proj_kernel,
        out_shape=jax.ShapeDtypeStruct((TB, G), jnp.float32),
        grid_spec=pltpu.PrefetchScalarGridSpec(
            num_scalar_prefetch=0,
            grid=(T // tc,),
            in_specs=[
                pl.BlockSpec((rows, D), lambda c: (c, 0)),
                pl.BlockSpec((D, G), lambda c: (0, 0)),
                pl.BlockSpec((1, G), lambda c: (0, 0)),
            ],
            out_specs=pl.BlockSpec((rows, G), lambda c: (c, 0)),
        ),
        compiler_params=pltpu.CompilerParams(
            dimension_semantics=("parallel",)),
    )(x_flat, w_ih, bias)


# ----------------------------------------------------------------------------
# Kernel 2: LSTM recurrence over a pre-projected gate sequence.
#   gates_t = x_proj[t] + h_{t-1} @ W_hh ; gate order (PyTorch): i, f, g, o.
# Grid iterates sequentially over time chunks; h/c persist in VMEM scratch.
# ----------------------------------------------------------------------------
def _lstm_recurrence_kernel(xp_ref, whh_ref, out_ref, h_scr, c_scr,
                            *, tc, batch, hidden):
    c_idx = pl.program_id(0)

    @pl.when(c_idx == 0)
    def _():
        h_scr[...] = jnp.zeros_like(h_scr)
        c_scr[...] = jnp.zeros_like(c_scr)

    h = h_scr[...]          # (B, H) f32
    c_state = c_scr[...]    # (B, H) f32
    w_hh = whh_ref[...].astype(MATMUL_INPUT_DTYPE)   # (H, 4H), hoisted cast

    # Fully unrolled inner loop over the time chunk (tc is a static Python int).
    for tt in range(tc):
        xp_t = xp_ref[pl.ds(tt * batch, batch), :]   # (B, 4H)
        gates = xp_t + jnp.dot(h.astype(MATMUL_INPUT_DTYPE), w_hh,
                               preferred_element_type=jnp.float32)
        i_g = jax.nn.sigmoid(gates[:, 0:hidden])
        f_g = jax.nn.sigmoid(gates[:, hidden:2 * hidden])
        g_g = jnp.tanh(gates[:, 2 * hidden:3 * hidden])
        o_g = jax.nn.sigmoid(gates[:, 3 * hidden:4 * hidden])
        c_state = f_g * c_state + i_g * g_g
        h = o_g * jnp.tanh(c_state)
        out_ref[pl.ds(tt * batch, batch), :] = h

    h_scr[...] = h
    c_scr[...] = c_state


def lstm_recurrence(x_proj, w_hh, T, B, tc):
    """x_proj: (T*B, 4H) -> hidden sequence (T*B, H), time-major flat."""
    TB, G = x_proj.shape
    H = w_hh.shape[0]
    rows = tc * B
    kernel = functools.partial(_lstm_recurrence_kernel,
                               tc=tc, batch=B, hidden=H)
    return pl.pallas_call(
        kernel,
        out_shape=jax.ShapeDtypeStruct((TB, H), jnp.float32),
        grid_spec=pltpu.PrefetchScalarGridSpec(
            num_scalar_prefetch=0,
            grid=(T // tc,),
            in_specs=[
                pl.BlockSpec((rows, G), lambda c: (c, 0)),
                # TODO(synk): for large H on v7x, single-buffer this constant
                # weight block (pipeline_mode=pl.Buffered(1)) to halve its VMEM.
                pl.BlockSpec((H, G), lambda c: (0, 0)),
            ],
            out_specs=pl.BlockSpec((rows, H), lambda c: (c, 0)),
            scratch_shapes=[
                pltpu.VMEM((B, H), jnp.float32),   # h state
                pltpu.VMEM((B, H), jnp.float32),   # c state
            ],
        ),
        compiler_params=pltpu.CompilerParams(
            dimension_semantics=("arbitrary",)),   # sequential recurrence
    )(x_proj, w_hh)


def lstm_layer(x_flat, w_ih, w_hh, bias, T, B, tc):
    x_proj = input_projection(x_flat, w_ih, bias, T, B, tc)
    return lstm_recurrence(x_proj, w_hh, T, B, tc)


# ----------------------------------------------------------------------------
# Kernel 3: head = [BatchNorm1d folded into] fc(H,128) -> ReLU -> fc2(128, out).
# BN (eval) is folded into fc1 in the wrapper; out columns padded to 128 lanes.
# ----------------------------------------------------------------------------
def _head_kernel(h_ref, w1_ref, b1_ref, w2_ref, b2_ref, out_ref):
    h = h_ref[...].astype(MATMUL_INPUT_DTYPE)
    z = (jnp.dot(h, w1_ref[...].astype(MATMUL_INPUT_DTYPE),
                 preferred_element_type=jnp.float32) + b1_ref[...])
    z = jnp.maximum(z, 0.0)
    out_ref[...] = (jnp.dot(z.astype(MATMUL_INPUT_DTYPE),
                            w2_ref[...].astype(MATMUL_INPUT_DTYPE),
                            preferred_element_type=jnp.float32) + b2_ref[...])


def head(h_last, w1, b1, w2, b2):
    Bp = h_last.shape[0]
    out_cols = w2.shape[1]
    vmem = pl.BlockSpec(memory_space=pltpu.MemorySpace.VMEM)
    return pl.pallas_call(
        _head_kernel,
        out_shape=jax.ShapeDtypeStruct((Bp, out_cols), jnp.float32),
        in_specs=[vmem] * 5,
        out_specs=vmem,
    )(h_last, w1, b1, w2, b2)


# ----------------------------------------------------------------------------
# Parameter construction (deterministic, PyTorch-like uniform init), with the
# gate-fused (D_in, 4H)/(H, 4H)/(1, 4H) layouts the kernels expect.
# ----------------------------------------------------------------------------
def init_params(key, input_size, hidden_size, num_layers, output_size):
    params = {"lstm": [], "head": {}}
    H = hidden_size
    k_lstm = 1.0 / jnp.sqrt(H)

    for layer in range(num_layers):
        d_in = input_size if layer == 0 else H
        key, k1, k2, k3, k4 = jax.random.split(key, 5)
        w_ih = jax.random.uniform(k1, (4 * H, d_in), jnp.float32, -k_lstm, k_lstm)
        w_hh = jax.random.uniform(k2, (4 * H, H), jnp.float32, -k_lstm, k_lstm)
        b_ih = jax.random.uniform(k3, (4 * H,), jnp.float32, -k_lstm, k_lstm)
        b_hh = jax.random.uniform(k4, (4 * H,), jnp.float32, -k_lstm, k_lstm)
        # Gate-fused, input-major layouts: columns are [i | f | g | o] blocks.
        w_ih_k = w_ih.T                      # (D_in, 4H)
        w_hh_k = w_hh.T                      # (H, 4H)
        b_k = (b_ih + b_hh).reshape(1, 4 * H)  # (1, 4H)
        params["lstm"].append((w_ih_k, w_hh_k, b_k))

    key, k1, k2, k3, k4 = jax.random.split(key, 5)
    k_fc1 = 1.0 / jnp.sqrt(H)
    k_fc2 = 1.0 / jnp.sqrt(128.0)
    params["head"] = dict(
        gamma=jnp.ones((H,), jnp.float32),
        beta=jnp.zeros((H,), jnp.float32),
        running_mean=jnp.zeros((H,), jnp.float32),
        running_var=jnp.ones((H,), jnp.float32),
        w1=jax.random.uniform(k1, (H, 128), jnp.float32, -k_fc1, k_fc1),
        b1=jax.random.uniform(k2, (1, 128), jnp.float32, -k_fc1, k_fc1),
        w2=jax.random.uniform(k3, (128, output_size), jnp.float32, -k_fc2, k_fc2),
        b2=jax.random.uniform(k4, (1, output_size), jnp.float32, -k_fc2, k_fc2),
    )
    return params


def lstm_forward(x, params):
    """x: (B, T, input_size) f32  ->  (B, output_size) f32 (eval mode)."""
    B, T, D = x.shape
    B_pad = _round_up(B, 8)          # sublane padding
    tc = _choose_time_chunk(T)

    x = x.astype(jnp.float32)
    if B_pad != B:
        x = jnp.pad(x, ((0, B_pad - B), (0, 0), (0, 0)))
    # One tiny transpose of the raw input; everything after stays time-major.
    h_flat = jnp.transpose(x, (1, 0, 2)).reshape(T * B_pad, D)

    for (w_ih, w_hh, b) in params["lstm"]:
        h_flat = lstm_layer(h_flat, w_ih, w_hh, b, T, B_pad, tc)

    h_last = h_flat[(T - 1) * B_pad:, :]          # == out[:, -1, :] (padded B)

    hp = params["head"]
    # Fold BatchNorm1d (eval, running stats) into fc1.
    scale = hp["gamma"] / jnp.sqrt(hp["running_var"] + 1e-5)        # (H,)
    shift = hp["beta"] - hp["running_mean"] * scale                 # (H,)
    w1f = hp["w1"] * scale[:, None]                                 # (H, 128)
    b1f = hp["b1"] + shift[None, :] @ hp["w1"]                      # (1, 128)

    # Pad fc2 output columns to a multiple of 128 lanes for unmasked stores.
    out_size = hp["w2"].shape[1]
    out_pad = _round_up(out_size, 128)
    w2p = jnp.pad(hp["w2"], ((0, 0), (0, out_pad - out_size)))
    b2p = jnp.pad(hp["b2"], ((0, 0), (0, out_pad - out_size)))

    out_padded = head(h_last, w1f, b1f, w2p, b2p)   # (B_pad, out_pad)
    return out_padded[:B, :out_size]


if __name__ == "__main__":
    B, T = 2, 8
    input_size, hidden_size, num_layers, output_size = 16, 32, 2, 4

    key = jax.random.PRNGKey(0)
    key, kx, kp = jax.random.split(key, 3)
    x = jax.random.normal(kx, (B, T, input_size), jnp.float32)
    params = init_params(kp, input_size, hidden_size, num_layers, output_size)

    out = jax.jit(lstm_forward)(x, params)
    out = jax.block_until_ready(out)
    assert out.shape == (B, output_size)
    assert bool(jnp.all(jnp.isfinite(out)))
    print("KERNEL_OK")
</pallas_src>

<mosaic_0001>
module attributes {stable_mosaic.version = 11 : i64} {
  func.func @_lstm_recurrence_kernel(%arg0: i32, %arg1: memref<64x128xf32, #tpu.memory_space<vmem>>, %arg2: memref<32x128xf32, #tpu.memory_space<vmem>>, %arg3: memref<64x32xf32, #tpu.memory_space<vmem>>, %arg4: memref<8x32xf32, #tpu.memory_space<vmem>>, %arg5: memref<8x32xf32, #tpu.memory_space<vmem>>) attributes {dimension_semantics = [#tpu.dimension_semantics<arbitrary>], iteration_bounds = array<i64: 1>, scalar_prefetch = 0 : i64, scratch_operands = 2 : i64, tpu.core_type = #tpu.core_type<tc>, window_params = [{transform_indices = @transform_0, window_bounds = array<i64: 64, 128>}, {pipeline_mode = #tpu.pipeline_mode<synchronous>, transform_indices = @transform_1, window_bounds = array<i64: 32, 128>}, {transform_indices = @transform_2, window_bounds = array<i64: 64, 32>}]} {
    %c0_i32 = arith.constant 0 : i32
    %0 = arith.cmpi eq, %arg0, %c0_i32 : i32
    %1 = arith.extui %0 : i1 to i32
    %c0_i32_0 = arith.constant 0 : i32
    %2 = arith.cmpi ne, %1, %c0_i32_0 : i32
    scf.if %2 {
      %cst_66 = arith.constant 0.000000e+00 : f32
      %240 = vector.broadcast %cst_66 : f32 to vector<8x32xf32>
      %c0_67 = arith.constant 0 : index
      %c0_68 = arith.constant 0 : index
      %241 = vector.load %arg4[%c0_67, %c0_68] : memref<8x32xf32, #tpu.memory_space<vmem>>, vector<8x32xf32>
      tpu.vector_store %arg4[%c0_67, %c0_68], %240 {strides = array<i32>} : memref<8x32xf32, #tpu.memory_space<vmem>>, vector<8x32xf32>,
      %cst_69 = arith.constant 0.000000e+00 : f32
      %242 = vector.broadcast %cst_69 : f32 to vector<8x32xf32>
      %c0_70 = arith.constant 0 : index
      %c0_71 = arith.constant 0 : index
      %243 = vector.load %arg5[%c0_70, %c0_71] : memref<8x32xf32, #tpu.memory_space<vmem>>, vector<8x32xf32>
      tpu.vector_store %arg5[%c0_70, %c0_71], %242 {strides = array<i32>} : memref<8x32xf32, #tpu.memory_space<vmem>>, vector<8x32xf32>,
    } else {
    }
    %c0 = arith.constant 0 : index
    %c0_1 = arith.constant 0 : index
    %3 = vector.load %arg4[%c0, %c0_1] : memref<8x32xf32, #tpu.memory_space<vmem>>, vector<8x32xf32>
    %c0_2 = arith.constant 0 : index
    %c0_3 = arith.constant 0 : index
    %4 = vector.load %arg5[%c0_2, %c0_3] : memref<8x32xf32, #tpu.memory_space<vmem>>, vector<8x32xf32>
    %c0_4 = arith.constant 0 : index
    %c0_5 = arith.constant 0 : index
    %5 = vector.load %arg2[%c0_4, %c0_5] : memref<32x128xf32, #tpu.memory_space<vmem>>, vector<32x128xf32>
    %c0_6 = arith.constant 0 : index
    %c0_7 = arith.constant 0 : index
    %6 = vector.load %arg1[%c0_6, %c0_7] : memref<64x128xf32, #tpu.memory_space<vmem>>, vector<8x128xf32>
    %cst = arith.constant dense<0.000000e+00> : vector<8x128xf32>
    %7 = tpu.matmul %3, %5, %cst {dimension_numbers = #tpu.dot_dimension_numbers<[1], [0], [0], [1], [0, 0, 1, 1], [], []>} : vector<8x32xf32>, vector<32x128xf32>, vector<8x128xf32> -> vector<8x128xf32>
    %8 = arith.addf %6, %7 : vector<8x128xf32>
    %9 = vector.extract_strided_slice %8 {offsets = [0, 0], sizes = [8, 32], strides = [1, 1]} : vector<8x128xf32> to vector<8x32xf32>
    %10 = arith.negf %9 : vector<8x32xf32>
    %11 = math.exp %10 : vector<8x32xf32>
    %cst_8 = arith.constant 1.000000e+00 : f32
    %12 = vector.broadcast %cst_8 : f32 to vector<8x32xf32>
    %13 = arith.addf %12, %11 : vector<8x32xf32>
    %14 = arith.divf %12, %13 : vector<8x32xf32>
    %15 = vector.extract_strided_slice %8 {offsets = [0, 32], sizes = [8, 32], strides = [1, 1]} : vector<8x128xf32> to vector<8x32xf32>
    %16 = arith.negf %15 : vector<8x32xf32>
    %17 = math.exp %16 : vector<8x32xf32>
    %cst_9 = arith.constant 1.000000e+00 : f32
    %18 = vector.broadcast %cst_9 : f32 to vector<8x32xf32>
    %19 = arith.addf %18, %17 : vector<8x32xf32>
    %20 = arith.divf %18, %19 : vector<8x32xf32>
    %21 = vector.extract_strided_slice %8 {offsets = [0, 64], sizes = [8, 32], strides = [1, 1]} : vector<8x128xf32> to vector<8x32xf32>
    %22 = math.tanh %21 : vector<8x32xf32>
    %23 = vector.extract_strided_slice %8 {offsets = [0, 96], sizes = [8, 32], strides = [1, 1]} : vector<8x128xf32> to vector<8x32xf32>
    %24 = arith.negf %23 : vector<8x32xf32>
    %25 = math.exp %24 : vector<8x32xf32>
    %cst_10 = arith.constant 1.000000e+00 : f32
    %26 = vector.broadcast %cst_10 : f32 to vector<8x32xf32>
    %27 = arith.addf %26, %25 : vector<8x32xf32>
    %28 = arith.divf %26, %27 : vector<8x32xf32>
    %29 = arith.mulf %20, %4 : vector<8x32xf32>
    %30 = arith.mulf %14, %22 : vector<8x32xf32>
    %31 = arith.addf %29, %30 : vector<8x32xf32>
    %32 = math.tanh %31 : vector<8x32xf32>
    %33 = arith.mulf %28, %32 : vector<8x32xf32>
    %c0_11 = arith.constant 0 : index
    %c0_12 = arith.constant 0 : index
    %34 = vector.load %arg3[%c0_11, %c0_12] : memref<64x32xf32, #tpu.memory_space<vmem>>, vector<8x32xf32>
    tpu.vector_store %arg3[%c0_11, %c0_12], %33 {strides = array<i32>} : memref<64x32xf32, #tpu.memory_space<vmem>>, vector<8x32xf32>,
    %c8 = arith.constant 8 : index
    %c0_13 = arith.constant 0 : index
    %35 = vector.load %arg1[%c8, %c0_13] : memref<64x128xf32, #tpu.memory_space<vmem>>, vector<8x128xf32>
    %cst_14 = arith.constant dense<0.000000e+00> : vector<8x128xf32>
    %36 = tpu.matmul %33, %5, %cst_14 {dimension_numbers = #tpu.dot_dimension_numbers<[1], [0], [0], [1], [0, 0, 1, 1], [], []>} : vector<8x32xf32>, vector<32x128xf32>, vector<8x128xf32> -> vector<8x128xf32>
    %37 = arith.addf %35, %36 : vector<8x128xf32>
    %38 = vector.extract_strided_slice %37 {offsets = [0, 0], sizes = [8, 32], strides = [1, 1]} : vector<8x128xf32> to vector<8x32xf32>
    %39 = arith.negf %38 : vector<8x32xf32>
    %40 = math.exp %39 : vector<8x32xf32>
    %cst_15 = arith.constant 1.000000e+00 : f32
    %41 = vector.broadcast %cst_15 : f32 to vector<8x32xf32>
    %42 = arith.addf %41, %40 : vector<8x32xf32>
    %43 = arith.divf %41, %42 : vector<8x32xf32>
    %44 = vector.extract_strided_slice %37 {offsets = [0, 32], sizes = [8, 32], strides = [1, 1]} : vector<8x128xf32> to vector<8x32xf32>
    %45 = arith.negf %44 : vector<8x32xf32>
    %46 = math.exp %45 : vector<8x32xf32>
    %cst_16 = arith.constant 1.000000e+00 : f32
    %47 = vector.broadcast %cst_16 : f32 to vector<8x32xf32>
    %48 = arith.addf %47, %46 : vector<8x32xf32>
    %49 = arith.divf %47, %48 : vector<8x32xf32>
    %50 = vector.extract_strided_slice %37 {offsets = [0, 64], sizes = [8, 32], strides = [1, 1]} : vector<8x128xf32> to vector<8x32xf32>
    %51 = math.tanh %50 : vector<8x32xf32>
    %52 = vector.extract_strided_slice %37 {offsets = [0, 96], sizes = [8, 32], strides = [1, 1]} : vector<8x128xf32> to vector<8x32xf32>
    %53 = arith.negf %52 : vector<8x32xf32>
    %54 = math.exp %53 : vector<8x32xf32>
    %cst_17 = arith.constant 1.000000e+00 : f32
    %55 = vector.broadcast %cst_17 : f32 to vector<8x32xf32>
    %56 = arith.addf %55, %54 : vector<8x32xf32>
    %57 = arith.divf %55, %56 : vector<8x32xf32>
    %58 = arith.mulf %49, %31 : vector<8x32xf32>
    %59 = arith.mulf %43, %51 : vector<8x32xf32>
    %60 = arith.addf %58, %59 : vector<8x32xf32>
    %61 = math.tanh %60 : vector<8x32xf32>
    %62 = arith.mulf %57, %61 : vector<8x32xf32>
    %c8_18 = arith.constant 8 : index
    %c0_19 = arith.constant 0 : index
    %63 = vector.load %arg3[%c8_18, %c0_19] : memref<64x32xf32, #tpu.memory_space<vmem>>, vector<8x32xf32>
    tpu.vector_store %arg3[%c8_18, %c0_19], %62 {strides = array<i32>} : memref<64x32xf32, #tpu.memory_space<vmem>>, vector<8x32xf32>,
    %c16 = arith.constant 16 : index
    %c0_20 = arith.constant 0 : index
    %64 = vector.load %arg1[%c16, %c0_20] : memref<64x128xf32, #tpu.memory_space<vmem>>, vector<8x128xf32>
    %cst_21 = arith.constant dense<0.000000e+00> : vector<8x128xf32>
    %65 = tpu.matmul %62, %5, %cst_21 {dimension_numbers = #tpu.dot_dimension_numbers<[1], [0], [0], [1], [0, 0, 1, 1], [], []>} : vector<8x32xf32>, vector<32x128xf32>, vector<8x128xf32> -> vector<8x128xf32>
    %66 = arith.addf %64, %65 : vector<8x128xf32>
    %67 = vector.extract_strided_slice %66 {offsets = [0, 0], sizes = [8, 32], strides = [1, 1]} : vector<8x128xf32> to vector<8x32xf32>
    %68 = arith.negf %67 : vector<8x32xf32>
    %69 = math.exp %68 : vector<8x32xf32>
    %cst_22 = arith.constant 1.000000e+00 : f32
    %70 = vector.broadcast %cst_22 : f32 to vector<8x32xf32>
    %71 = arith.addf %70, %69 : vector<8x32xf32>
    %72 = arith.divf %70, %71 : vector<8x32xf32>
    %73 = vector.extract_strided_slice %66 {offsets = [0, 32], sizes = [8, 32], strides = [1, 1]} : vector<8x128xf32> to vector<8x32xf32>
    %74 = arith.negf %73 : vector<8x32xf32>
    %75 = math.exp %74 : vector<8x32xf32>
    %cst_23 = arith.constant 1.000000e+00 : f32
    %76 = vector.broadcast %cst_23 : f32 to vector<8x32xf32>
    %77 = arith.addf %76, %75 : vector<8x32xf32>
    %78 = arith.divf %76, %77 : vector<8x32xf32>
    %79 = vector.extract_strided_slice %66 {offsets = [0, 64], sizes = [8, 32], strides = [1, 1]} : vector<8x128xf32> to vector<8x32xf32>
    %80 = math.tanh %79 : vector<8x32xf32>
    %81 = vector.extract_strided_slice %66 {offsets = [0, 96], sizes = [8, 32], strides = [1, 1]} : vector<8x128xf32> to vector<8x32xf32>
    %82 = arith.negf %81 : vector<8x32xf32>
    %83 = math.exp %82 : vector<8x32xf32>
    %cst_24 = arith.constant 1.000000e+00 : f32
    %84 = vector.broadcast %cst_24 : f32 to vector<8x32xf32>
    %85 = arith.addf %84, %83 : vector<8x32xf32>
    %86 = arith.divf %84, %85 : vector<8x32xf32>
    %87 = arith.mulf %78, %60 : vector<8x32xf32>
    %88 = arith.mulf %72, %80 : vector<8x32xf32>
    %89 = arith.addf %87, %88 : vector<8x32xf32>
    %90 = math.tanh %89 : vector<8x32xf32>
    %91 = arith.mulf %86, %90 : vector<8x32xf32>
    %c16_25 = arith.constant 16 : index
    %c0_26 = arith.constant 0 : index
    %92 = vector.load %arg3[%c16_25, %c0_26] : memref<64x32xf32, #tpu.memory_space<vmem>>, vector<8x32xf32>
    tpu.vector_store %arg3[%c16_25, %c0_26], %91 {strides = array<i32>} : memref<64x32xf32, #tpu.memory_space<vmem>>, vector<8x32xf32>,
    %c24 = arith.constant 24 : index
    %c0_27 = arith.constant 0 : index
    %93 = vector.load %arg1[%c24, %c0_27] : memref<64x128xf32, #tpu.memory_space<vmem>>, vector<8x128xf32>
    %cst_28 = arith.constant dense<0.000000e+00> : vector<8x128xf32>
    %94 = tpu.matmul %91, %5, %cst_28 {dimension_numbers = #tpu.dot_dimension_numbers<[1], [0], [0], [1], [0, 0, 1, 1], [], []>} : vector<8x32xf32>, vector<32x128xf32>, vector<8x128xf32> -> vector<8x128xf32>
    %95 = arith.addf %93, %94 : vector<8x128xf32>
    %96 = vector.extract_strided_slice %95 {offsets = [0, 0], sizes = [8, 32], strides = [1, 1]} : vector<8x128xf32> to vector<8x32xf32>
    %97 = arith.negf %96 : vector<8x32xf32>
    %98 = math.exp %97 : vector<8x32xf32>
    %cst_29 = arith.constant 1.000000e+00 : f32
    %99 = vector.broadcast %cst_29 : f32 to vector<8x32xf32>
    %100 = arith.addf %99, %98 : vector<8x32xf32>
    %101 = arith.divf %99, %100 : vector<8x32xf32>
    %102 = vector.extract_strided_slice %95 {offsets = [0, 32], sizes = [8, 32], strides = [1, 1]} : vector<8x128xf32> to vector<8x32xf32>
    %103 = arith.negf %102 : vector<8x32xf32>
    %104 = math.exp %103 : vector<8x32xf32>
    %cst_30 = arith.constant 1.000000e+00 : f32
    %105 = vector.broadcast %cst_30 : f32 to vector<8x32xf32>
    %106 = arith.addf %105, %104 : vector<8x32xf32>
    %107 = arith.divf %105, %106 : vector<8x32xf32>
    %108 = vector.extract_strided_slice %95 {offsets = [0, 64], sizes = [8, 32], strides = [1, 1]} : vector<8x128xf32> to vector<8x32xf32>
    %109 = math.tanh %108 : vector<8x32xf32>
    %110 = vector.extract_strided_slice %95 {offsets = [0, 96], sizes = [8, 32], strides = [1, 1]} : vector<8x128xf32> to vector<8x32xf32>
    %111 = arith.negf %110 : vector<8x32xf32>
    %112 = math.exp %111 : vector<8x32xf32>
    %cst_31 = arith.constant 1.000000e+00 : f32
    %113 = vector.broadcast %cst_31 : f32 to vector<8x32xf32>
    %114 = arith.addf %113, %112 : vector<8x32xf32>
    %115 = arith.divf %113, %114 : vector<8x32xf32>
    %116 = arith.mulf %107, %89 : vector<8x32xf32>
    %117 = arith.mulf %101, %109 : vector<8x32xf32>
    %118 = arith.addf %116, %117 : vector<8x32xf32>
    %119 = math.tanh %118 : vector<8x32xf32>
    %120 = arith.mulf %115, %119 : vector<8x32xf32>
    %c24_32 = arith.constant 24 : index
    %c0_33 = arith.constant 0 : index
    %121 = vector.load %arg3[%c24_32, %c0_33] : memref<64x32xf32, #tpu.memory_space<vmem>>, vector<8x32xf32>
    tpu.vector_store %arg3[%c24_32, %c0_33], %120 {strides = array<i32>} : memref<64x32xf32, #tpu.memory_space<vmem>>, vector<8x32xf32>,
    %c32 = arith.constant 32 : index
    %c0_34 = arith.constant 0 : index
    %122 = vector.load %arg1[%c32, %c0_34] : memref<64x128xf32, #tpu.memory_space<vmem>>, vector<8x128xf32>
    %cst_35 = arith.constant dense<0.000000e+00> : vector<8x128xf32>
    %123 = tpu.matmul %120, %5, %cst_35 {dimension_numbers = #tpu.dot_dimension_numbers<[1], [0], [0], [1], [0, 0, 1, 1], [], []>} : vector<8x32xf32>, vector<32x128xf32>, vector<8x128xf32> -> vector<8x128xf32>
    %124 = arith.addf %122, %123 : vector<8x128xf32>
    %125 = vector.extract_strided_slice %124 {offsets = [0, 0], sizes = [8, 32], strides = [1, 1]} : vector<8x128xf32> to vector<8x32xf32>
    %126 = arith.negf %125 : vector<8x32xf32>
    %127 = math.exp %126 : vector<8x32xf32>
    %cst_36 = arith.constant 1.000000e+00 : f32
    %128 = vector.broadcast %cst_36 : f32 to vector<8x32xf32>
    %129 = arith.addf %128, %127 : vector<8x32xf32>
    %130 = arith.divf %128, %129 : vector<8x32xf32>
    %131 = vector.extract_strided_slice %124 {offsets = [0, 32], sizes = [8, 32], strides = [1, 1]} : vector<8x128xf32> to vector<8x32xf32>
    %132 = arith.negf %131 : vector<8x32xf32>
    %133 = math.exp %132 : vector<8x32xf32>
    %cst_37 = arith.constant 1.000000e+00 : f32
    %134 = vector.broadcast %cst_37 : f32 to vector<8x32xf32>
    %135 = arith.addf %134, %133 : vector<8x32xf32>
    %136 = arith.divf %134, %135 : vector<8x32xf32>
    %137 = vector.extract_strided_slice %124 {offsets = [0, 64], sizes = [8, 32], strides = [1, 1]} : vector<8x128xf32> to vector<8x32xf32>
    %138 = math.tanh %137 : vector<8x32xf32>
    %139 = vector.extract_strided_slice %124 {offsets = [0, 96], sizes = [8, 32], strides = [1, 1]} : vector<8x128xf32> to vector<8x32xf32>
    %140 = arith.negf %139 : vector<8x32xf32>
    %141 = math.exp %140 : vector<8x32xf32>
    %cst_38 = arith.constant 1.000000e+00 : f32
    %142 = vector.broadcast %cst_38 : f32 to vector<8x32xf32>
    %143 = arith.addf %142, %141 : vector<8x32xf32>
    %144 = arith.divf %142, %143 : vector<8x32xf32>
    %145 = arith.mulf %136, %118 : vector<8x32xf32>
    %146 = arith.mulf %130, %138 : vector<8x32xf32>
    %147 = arith.addf %145, %146 : vector<8x32xf32>
    %148 = math.tanh %147 : vector<8x32xf32>
    %149 = arith.mulf %144, %148 : vector<8x32xf32>
    %c32_39 = arith.constant 32 : index
    %c0_40 = arith.constant 0 : index
    %150 = vector.load %arg3[%c32_39, %c0_40] : memref<64x32xf32, #tpu.memory_space<vmem>>, vector<8x32xf32>
    tpu.vector_store %arg3[%c32_39, %c0_40], %149 {strides = array<i32>} : memref<64x32xf32, #tpu.memory_space<vmem>>, vector<8x32xf32>,
    %c40 = arith.constant 40 : index
    %c0_41 = arith.constant 0 : index
    %151 = vector.load %arg1[%c40, %c0_41] : memref<64x128xf32, #tpu.memory_space<vmem>>, vector<8x128xf32>
    %cst_42 = arith.constant dense<0.000000e+00> : vector<8x128xf32>
    %152 = tpu.matmul %149, %5, %cst_42 {dimension_numbers = #tpu.dot_dimension_numbers<[1], [0], [0], [1], [0, 0, 1, 1], [], []>} : vector<8x32xf32>, vector<32x128xf32>, vector<8x128xf32> -> vector<8x128xf32>
    %153 = arith.addf %151, %152 : vector<8x128xf32>
    %154 = vector.extract_strided_slice %153 {offsets = [0, 0], sizes = [8, 32], strides = [1, 1]} : vector<8x128xf32> to vector<8x32xf32>
    %155 = arith.negf %154 : vector<8x32xf32>
    %156 = math.exp %155 : vector<8x32xf32>
    %cst_43 = arith.constant 1.000000e+00 : f32
    %157 = vector.broadcast %cst_43 : f32 to vector<8x32xf32>
    %158 = arith.addf %157, %156 : vector<8x32xf32>
    %159 = arith.divf %157, %158 : vector<8x32xf32>
    %160 = vector.extract_strided_slice %153 {offsets = [0, 32], sizes = [8, 32], strides = [1, 1]} : vector<8x128xf32> to vector<8x32xf32>
    %161 = arith.negf %160 : vector<8x32xf32>
    %162 = math.exp %161 : vector<8x32xf32>
    %cst_44 = arith.constant 1.000000e+00 : f32
    %163 = vector.broadcast %cst_44 : f32 to vector<8x32xf32>
    %164 = arith.addf %163, %162 : vector<8x32xf32>
    %165 = arith.divf %163, %164 : vector<8x32xf32>
    %166 = vector.extract_strided_slice %153 {offsets = [0, 64], sizes = [8, 32], strides = [1, 1]} : vector<8x128xf32> to vector<8x32xf32>
    %167 = math.tanh %166 : vector<8x32xf32>
    %168 = vector.extract_strided_slice %153 {offsets = [0, 96], sizes = [8, 32], strides = [1, 1]} : vector<8x128xf32> to vector<8x32xf32>
    %169 = arith.negf %168 : vector<8x32xf32>
    %170 = math.exp %169 : vector<8x32xf32>
    %cst_45 = arith.constant 1.000000e+00 : f32
    %171 = vector.broadcast %cst_45 : f32 to vector<8x32xf32>
    %172 = arith.addf %171, %170 : vector<8x32xf32>
    %173 = arith.divf %171, %172 : vector<8x32xf32>
    %174 = arith.mulf %165, %147 : vector<8x32xf32>
    %175 = arith.mulf %159, %167 : vector<8x32xf32>
    %176 = arith.addf %174, %175 : vector<8x32xf32>
    %177 = math.tanh %176 : vector<8x32xf32>
    %178 = arith.mulf %173, %177 : vector<8x32xf32>
    %c40_46 = arith.constant 40 : index
    %c0_47 = arith.constant 0 : index
    %179 = vector.load %arg3[%c40_46, %c0_47] : memref<64x32xf32, #tpu.memory_space<vmem>>, vector<8x32xf32>
    tpu.vector_store %arg3[%c40_46, %c0_47], %178 {strides = array<i32>} : memref<64x32xf32, #tpu.memory_space<vmem>>, vector<8x32xf32>,
    %c48 = arith.constant 48 : index
    %c0_48 = arith.constant 0 : index
    %180 = vector.load %arg1[%c48, %c0_48] : memref<64x128xf32, #tpu.memory_space<vmem>>, vector<8x128xf32>
    %cst_49 = arith.constant dense<0.000000e+00> : vector<8x128xf32>
    %181 = tpu.matmul %178, %5, %cst_49 {dimension_numbers = #tpu.dot_dimension_numbers<[1], [0], [0], [1], [0, 0, 1, 1], [], []>} : vector<8x32xf32>, vector<32x128xf32>, vector<8x128xf32> -> vector<8x128xf32>
    %182 = arith.addf %180, %181 : vector<8x128xf32>
    %183 = vector.extract_strided_slice %182 {offsets = [0, 0], sizes = [8, 32], strides = [1, 1]} : vector<8x128xf32> to vector<8x32xf32>
    %184 = arith.negf %183 : vector<8x32xf32>
    %185 = math.exp %184 : vector<8x32xf32>
    %cst_50 = arith.constant 1.000000e+00 : f32
    %186 = vector.broadcast %cst_50 : f32 to vector<8x32xf32>
    %187 = arith.addf %186, %185 : vector<8x32xf32>
    %188 = arith.divf %186, %187 : vector<8x32xf32>
    %189 = vector.extract_strided_slice %182 {offsets = [0, 32], sizes = [8, 32], strides = [1, 1]} : vector<8x128xf32> to vector<8x32xf32>
    %190 = arith.negf %189 : vector<8x32xf32>
    %191 = math.exp %190 : vector<8x32xf32>
    %cst_51 = arith.constant 1.000000e+00 : f32
    %192 = vector.broadcast %cst_51 : f32 to vector<8x32xf32>
    %193 = arith.addf %192, %191 : vector<8x32xf32>
    %194 = arith.divf %192, %193 : vector<8x32xf32>
    %195 = vector.extract_strided_slice %182 {offsets = [0, 64], sizes = [8, 32], strides = [1, 1]} : vector<8x128xf32> to vector<8x32xf32>
    %196 = math.tanh %195 : vector<8x32xf32>
    %197 = vector.extract_strided_slice %182 {offsets = [0, 96], sizes = [8, 32], strides = [1, 1]} : vector<8x128xf32> to vector<8x32xf32>
    %198 = arith.negf %197 : vector<8x32xf32>
    %199 = math.exp %198 : vector<8x32xf32>
    %cst_52 = arith.constant 1.000000e+00 : f32
    %200 = vector.broadcast %cst_52 : f32 to vector<8x32xf32>
    %201 = arith.addf %200, %199 : vector<8x32xf32>
    %202 = arith.divf %200, %201 : vector<8x32xf32>
    %203 = arith.mulf %194, %176 : vector<8x32xf32>
    %204 = arith.mulf %188, %196 : vector<8x32xf32>
    %205 = arith.addf %203, %204 : vector<8x32xf32>
    %206 = math.tanh %205 : vector<8x32xf32>
    %207 = arith.mulf %202, %206 : vector<8x32xf32>
    %c48_53 = arith.constant 48 : index
    %c0_54 = arith.constant 0 : index
    %208 = vector.load %arg3[%c48_53, %c0_54] : memref<64x32xf32, #tpu.memory_space<vmem>>, vector<8x32xf32>
    tpu.vector_store %arg3[%c48_53, %c0_54], %207 {strides = array<i32>} : memref<64x32xf32, #tpu.memory_space<vmem>>, vector<8x32xf32>,
    %c56 = arith.constant 56 : index
    %c0_55 = arith.constant 0 : index
    %209 = vector.load %arg1[%c56, %c0_55] : memref<64x128xf32, #tpu.memory_space<vmem>>, vector<8x128xf32>
    %cst_56 = arith.constant dense<0.000000e+00> : vector<8x128xf32>
    %210 = tpu.matmul %207, %5, %cst_56 {dimension_numbers = #tpu.dot_dimension_numbers<[1], [0], [0], [1], [0, 0, 1, 1], [], []>} : vector<8x32xf32>, vector<32x128xf32>, vector<8x128xf32> -> vector<8x128xf32>
    %211 = arith.addf %209, %210 : vector<8x128xf32>
    %212 = vector.extract_strided_slice %211 {offsets = [0, 0], sizes = [8, 32], strides = [1, 1]} : vector<8x128xf32> to vector<8x32xf32>
    %213 = arith.negf %212 : vector<8x32xf32>
    %214 = math.exp %213 : vector<8x32xf32>
    %cst_57 = arith.constant 1.000000e+00 : f32
    %215 = vector.broadcast %cst_57 : f32 to vector<8x32xf32>
    %216 = arith.addf %215, %214 : vector<8x32xf32>
    %217 = arith.divf %215, %216 : vector<8x32xf32>
    %218 = vector.extract_strided_slice %211 {offsets = [0, 32], sizes = [8, 32], strides = [1, 1]} : vector<8x128xf32> to vector<8x32xf32>
    %219 = arith.negf %218 : vector<8x32xf32>
    %220 = math.exp %219 : vector<8x32xf32>
    %cst_58 = arith.constant 1.000000e+00 : f32
    %221 = vector.broadcast %cst_58 : f32 to vector<8x32xf32>
    %222 = arith.addf %221, %220 : vector<8x32xf32>
    %223 = arith.divf %221, %222 : vector<8x32xf32>
    %224 = vector.extract_strided_slice %211 {offsets = [0, 64], sizes = [8, 32], strides = [1, 1]} : vector<8x128xf32> to vector<8x32xf32>
    %225 = math.tanh %224 : vector<8x32xf32>
    %226 = vector.extract_strided_slice %211 {offsets = [0, 96], sizes = [8, 32], strides = [1, 1]} : vector<8x128xf32> to vector<8x32xf32>
    %227 = arith.negf %226 : vector<8x32xf32>
    %228 = math.exp %227 : vector<8x32xf32>
    %cst_59 = arith.constant 1.000000e+00 : f32
    %229 = vector.broadcast %cst_59 : f32 to vector<8x32xf32>
    %230 = arith.addf %229, %228 : vector<8x32xf32>
    %231 = arith.divf %229, %230 : vector<8x32xf32>
    %232 = arith.mulf %223, %205 : vector<8x32xf32>
    %233 = arith.mulf %217, %225 : vector<8x32xf32>
    %234 = arith.addf %232, %233 : vector<8x32xf32>
    %235 = math.tanh %234 : vector<8x32xf32>
    %236 = arith.mulf %231, %235 : vector<8x32xf32>
    %c56_60 = arith.constant 56 : index
    %c0_61 = arith.constant 0 : index
    %237 = vector.load %arg3[%c56_60, %c0_61] : memref<64x32xf32, #tpu.memory_space<vmem>>, vector<8x32xf32>
    tpu.vector_store %arg3[%c56_60, %c0_61], %236 {strides = array<i32>} : memref<64x32xf32, #tpu.memory_space<vmem>>, vector<8x32xf32>,
    %c0_62 = arith.constant 0 : index
    %c0_63 = arith.constant 0 : index
    %238 = vector.load %arg4[%c0_62, %c0_63] : memref<8x32xf32, #tpu.memory_space<vmem>>, vector<8x32xf32>
    tpu.vector_store %arg4[%c0_62, %c0_63], %236 {strides = array<i32>} : memref<8x32xf32, #tpu.memory_space<vmem>>, vector<8x32xf32>,
    %c0_64 = arith.constant 0 : index
    %c0_65 = arith.constant 0 : index
    %239 = vector.load %arg5[%c0_64, %c0_65] : memref<8x32xf32, #tpu.memory_space<vmem>>, vector<8x32xf32>
    tpu.vector_store %arg5[%c0_64, %c0_65], %234 {strides = array<i32>} : memref<8x32xf32, #tpu.memory_space<vmem>>, vector<8x32xf32>,
    return
  }
  func.func @transform_0(%arg0: i32) -> (i32, i32) {
    %c0_i32 = arith.constant 0 : i32
    %c0_i32_0 = arith.constant 0 : i32
    return %arg0, %c0_i32 : i32, i32
  }
  func.func @transform_1(%arg0: i32) -> (i32, i32) {
    %c0_i32 = arith.constant 0 : i32
    %c0_i32_0 = arith.constant 0 : i32
    %c0_i32_1 = arith.constant 0 : i32
    return %c0_i32, %c0_i32_0 : i32, i32
  }
  func.func @transform_2(%arg0: i32) -> (i32, i32) {
    %c0_i32 = arith.constant 0 : i32
    %c0_i32_0 = arith.constant 0 : i32
    return %arg0, %c0_i32 : i32, i32
  }
}

module attributes {stable_mosaic.version = 11 : i64} {
  func.func @_input_proj_kernel(%arg0: i32, %arg1: memref<64x16xf32, #tpu.memory_space<vmem>>, %arg2: memref<16x128xf32, #tpu.memory_space<vmem>>, %arg3: memref<1x128xf32, #tpu.memory_space<vmem>>, %arg4: memref<64x128xf32, #tpu.memory_space<vmem>>) attributes {dimension_semantics = [#tpu.dimension_semantics<parallel>], iteration_bounds = array<i64: 1>, scalar_prefetch = 0 : i64, scratch_operands = 0 : i64, tpu.core_type = #tpu.core_type<tc>, window_params = [{transform_indices = @transform_0, window_bounds = array<i64: 64, 16>}, {pipeline_mode = #tpu.pipeline_mode<synchronous>, transform_indices = @transform_1, window_bounds = array<i64: 16, 128>}, {pipeline_mode = #tpu.pipeline_mode<synchronous>, transform_indices = @transform_2, window_bounds = array<i64: 1, 128>}, {transform_indices = @transform_3, window_bounds = array<i64: 64, 128>}]} {
    %c0 = arith.constant 0 : index
    %c0_0 = arith.constant 0 : index
    %0 = vector.load %arg1[%c0, %c0_0] : memref<64x16xf32, #tpu.memory_space<vmem>>, vector<64x16xf32>
    %c0_1 = arith.constant 0 : index
    %c0_2 = arith.constant 0 : index
    %1 = vector.load %arg2[%c0_1, %c0_2] : memref<16x128xf32, #tpu.memory_space<vmem>>, vector<16x128xf32>
    %cst = arith.constant dense<0.000000e+00> : vector<64x128xf32>
    %2 = tpu.matmul %0, %1, %cst {dimension_numbers = #tpu.dot_dimension_numbers<[1], [0], [0], [1], [0, 0, 1, 1], [], []>} : vector<64x16xf32>, vector<16x128xf32>, vector<64x128xf32> -> vector<64x128xf32>
    %c0_3 = arith.constant 0 : index
    %c0_4 = arith.constant 0 : index
    %3 = vector.load %arg3[%c0_3, %c0_4] : memref<1x128xf32, #tpu.memory_space<vmem>>, vector<1x128xf32>
    %4 = vector.broadcast %3 : vector<1x128xf32> to vector<64x128xf32>
    %5 = arith.addf %2, %4 : vector<64x128xf32>
    %c0_5 = arith.constant 0 : index
    %c0_6 = arith.constant 0 : index
    %6 = vector.load %arg4[%c0_5, %c0_6] : memref<64x128xf32, #tpu.memory_space<vmem>>, vector<64x128xf32>
    tpu.vector_store %arg4[%c0_5, %c0_6], %5 {strides = array<i32>} : memref<64x128xf32, #tpu.memory_space<vmem>>, vector<64x128xf32>,
    return
  }
  func.func @transform_0(%arg0: i32) -> (i32, i32) {
    %c0_i32 = arith.constant 0 : i32
    %c0_i32_0 = arith.constant 0 : i32
    return %arg0, %c0_i32 : i32, i32
  }
  func.func @transform_1(%arg0: i32) -> (i32, i32) {
    %c0_i32 = arith.constant 0 : i32
    %c0_i32_0 = arith.constant 0 : i32
    %c0_i32_1 = arith.constant 0 : i32
    return %c0_i32, %c0_i32_0 : i32, i32
  }
  func.func @transform_2(%arg0: i32) -> (i32, i32) {
    %c0_i32 = arith.constant 0 : i32
    %c0_i32_0 = arith.constant 0 : i32
    %c0_i32_1 = arith.constant 0 : i32
    return %c0_i32, %c0_i32_0 : i32, i32
  }
  func.func @transform_3(%arg0: i32) -> (i32, i32) {
    %c0_i32 = arith.constant 0 : i32
    %c0_i32_0 = arith.constant 0 : i32
    return %arg0, %c0_i32 : i32, i32
  }
}

module attributes {stable_mosaic.version = 11 : i64} {
  func.func @_input_proj_kernel(%arg0: i32, %arg1: memref<64x32xf32, #tpu.memory_space<vmem>>, %arg2: memref<32x128xf32, #tpu.memory_space<vmem>>, %arg3: memref<1x128xf32, #tpu.memory_space<vmem>>, %arg4: memref<64x128xf32, #tpu.memory_space<vmem>>) attributes {dimension_semantics = [#tpu.dimension_semantics<parallel>], iteration_bounds = array<i64: 1>, scalar_prefetch = 0 : i64, scratch_operands = 0 : i64, tpu.core_type = #tpu.core_type<tc>, window_params = [{transform_indices = @transform_0, window_bounds = array<i64: 64, 32>}, {pipeline_mode = #tpu.pipeline_mode<synchronous>, transform_indices = @transform_1, window_bounds = array<i64: 32, 128>}, {pipeline_mode = #tpu.pipeline_mode<synchronous>, transform_indices = @transform_2, window_bounds = array<i64: 1, 128>}, {transform_indices = @transform_3, window_bounds = array<i64: 64, 128>}]} {
    %c0 = arith.constant 0 : index
    %c0_0 = arith.constant 0 : index
    %0 = vector.load %arg1[%c0, %c0_0] : memref<64x32xf32, #tpu.memory_space<vmem>>, vector<64x32xf32>
    %c0_1 = arith.constant 0 : index
    %c0_2 = arith.constant 0 : index
    %1 = vector.load %arg2[%c0_1, %c0_2] : memref<32x128xf32, #tpu.memory_space<vmem>>, vector<32x128xf32>
    %cst = arith.constant dense<0.000000e+00> : vector<64x128xf32>
    %2 = tpu.matmul %0, %1, %cst {dimension_numbers = #tpu.dot_dimension_numbers<[1], [0], [0], [1], [0, 0, 1, 1], [], []>} : vector<64x32xf32>, vector<32x128xf32>, vector<64x128xf32> -> vector<64x128xf32>
    %c0_3 = arith.constant 0 : index
    %c0_4 = arith.constant 0 : index
    %3 = vector.load %arg3[%c0_3, %c0_4] : memref<1x128xf32, #tpu.memory_space<vmem>>, vector<1x128xf32>
    %4 = vector.broadcast %3 : vector<1x128xf32> to vector<64x128xf32>
    %5 = arith.addf %2, %4 : vector<64x128xf32>
    %c0_5 = arith.constant 0 : index
    %c0_6 = arith.constant 0 : index
    %6 = vector.load %arg4[%c0_5, %c0_6] : memref<64x128xf32, #tpu.memory_space<vmem>>, vector<64x128xf32>
    tpu.vector_store %arg4[%c0_5, %c0_6], %5 {strides = array<i32>} : memref<64x128xf32, #tpu.memory_space<vmem>>, vector<64x128xf32>,
    return
  }
  func.func @transform_0(%arg0: i32) -> (i32, i32) {
    %c0_i32 = arith.constant 0 : i32
    %c0_i32_0 = arith.constant 0 : i32
    return %arg0, %c0_i32 : i32, i32
  }
  func.func @transform_1(%arg0: i32) -> (i32, i32) {
    %c0_i32 = arith.constant 0 : i32
    %c0_i32_0 = arith.constant 0 : i32
    %c0_i32_1 = arith.constant 0 : i32
    return %c0_i32, %c0_i32_0 : i32, i32
  }
  func.func @transform_2(%arg0: i32) -> (i32, i32) {
    %c0_i32 = arith.constant 0 : i32
    %c0_i32_0 = arith.constant 0 : i32
    %c0_i32_1 = arith.constant 0 : i32
    return %c0_i32, %c0_i32_0 : i32, i32
  }
  func.func @transform_3(%arg0: i32) -> (i32, i32) {
    %c0_i32 = arith.constant 0 : i32
    %c0_i32_0 = arith.constant 0 : i32
    return %arg0, %c0_i32 : i32, i32
  }
}

module attributes {stable_mosaic.version = 11 : i64} {
  func.func @_head_kernel(%arg0: memref<8x32xf32, #tpu.memory_space<vmem>>, %arg1: memref<32x128xf32, #tpu.memory_space<vmem>>, %arg2: memref<1x128xf32, #tpu.memory_space<vmem>>, %arg3: memref<128x128xf32, #tpu.memory_space<vmem>>, %arg4: memref<1x128xf32, #tpu.memory_space<vmem>>, %arg5: memref<8x128xf32, #tpu.memory_space<vmem>>) attributes {dimension_semantics = [], scalar_prefetch = 0 : i64, scratch_operands = 0 : i64, tpu.core_type = #tpu.core_type<tc>} {
    %c0 = arith.constant 0 : index
    %c0_0 = arith.constant 0 : index
    %0 = vector.load %arg0[%c0, %c0_0] : memref<8x32xf32, #tpu.memory_space<vmem>>, vector<8x32xf32>
    %c0_1 = arith.constant 0 : index
    %c0_2 = arith.constant 0 : index
    %1 = vector.load %arg1[%c0_1, %c0_2] : memref<32x128xf32, #tpu.memory_space<vmem>>, vector<32x128xf32>
    %cst = arith.constant dense<0.000000e+00> : vector<8x128xf32>
    %2 = tpu.matmul %0, %1, %cst {dimension_numbers = #tpu.dot_dimension_numbers<[1], [0], [0], [1], [0, 0, 1, 1], [], []>} : vector<8x32xf32>, vector<32x128xf32>, vector<8x128xf32> -> vector<8x128xf32>
    %c0_3 = arith.constant 0 : index
    %c0_4 = arith.constant 0 : index
    %3 = vector.load %arg2[%c0_3, %c0_4] : memref<1x128xf32, #tpu.memory_space<vmem>>, vector<1x128xf32>
    %4 = vector.broadcast %3 : vector<1x128xf32> to vector<8x128xf32>
    %5 = arith.addf %2, %4 : vector<8x128xf32>
    %cst_5 = arith.constant 0.000000e+00 : f32
    %6 = vector.broadcast %cst_5 : f32 to vector<8x128xf32>
    %7 = arith.maximumf %5, %6 : vector<8x128xf32>
    %c0_6 = arith.constant 0 : index
    %c0_7 = arith.constant 0 : index
    %8 = vector.load %arg3[%c0_6, %c0_7] : memref<128x128xf32, #tpu.memory_space<vmem>>, vector<128x128xf32>
    %cst_8 = arith.constant dense<0.000000e+00> : vector<8x128xf32>
    %9 = tpu.matmul %7, %8, %cst_8 {dimension_numbers = #tpu.dot_dimension_numbers<[1], [0], [0], [1], [0, 0, 1, 1], [], []>} : vector<8x128xf32>, vector<128x128xf32>, vector<8x128xf32> -> vector<8x128xf32>
    %c0_9 = arith.constant 0 : index
    %c0_10 = arith.constant 0 : index
    %10 = vector.load %arg4[%c0_9, %c0_10] : memref<1x128xf32, #tpu.memory_space<vmem>>, vector<1x128xf32>
    %11 = vector.broadcast %10 : vector<1x128xf32> to vector<8x128xf32>
    %12 = arith.addf %9, %11 : vector<8x128xf32>
    %c0_11 = arith.constant 0 : index
    %c0_12 = arith.constant 0 : index
    %13 = vector.load %arg5[%c0_11, %c0_12] : memref<8x128xf32, #tpu.memory_space<vmem>>, vector<8x128xf32>
    tpu.vector_store %arg5[%c0_11, %c0_12], %12 {strides = array<i32>} : memref<8x128xf32, #tpu.memory_space<vmem>>, vector<8x128xf32>,
    return
  }
}

</mosaic_0001>

<llo_original>
// kernel: lstm_forward.6
$region0: #{lstm_forward.6}
  #allocation0 [shape = 'u32[]', space=smem, size = 0x4, offset = 0x4, fixed_abs, tag = 'smem constant byte address 0x4 - core index']
  #allocation1 [shape = 'u32[144,128]{1,0:T(1,128)}', space=vmem, size = 0x12000, scoped, tag = 'internal scratch']
  #allocation2 [shape = 'f32[8,32]{1,0:T(8,128)}', space=vmem, size = 0x1000, scoped, tag = 'scratch operand']
  #allocation3 [shape = 'f32[8,32]{1,0:T(8,128)}', space=vmem, size = 0x1000, scoped, tag = 'scratch operand']
  %s0 = inlined_call_operand.vmem [shape: f32[64,128], index: 0, kind: input, shape index: {}]
  %s1 = inlined_call_operand.vmem [shape: f32[32,128], index: 1, kind: input, shape index: {}]
  %s2 = inlined_call_operand.vmem [shape: f32[64,32], index: 2, kind: output, shape index: {}]
  %s3 = sld [smem:[#allocation0]]
  $region22: #{lstm_forward.6} parent=0
    _
  %s5 = ssub.s32 1, %s3
  %s6 = scalar_select 0, %s5, %s3
  // Predicated region
  $region2: #{lstm_forward.6} parent=0 // pred_check
    _
  $region3: #{lstm_forward.6} parent=0 // pred_check_branch
    %8 = sbr.rel (0) target = $region5
  $region4: #{lstm_forward.6} parent=0 // pred_region
    _
  $region5: #{lstm_forward.6} parent=0 // pred_fallthru
    _
  // Predicated region
  $region6: #{lstm_forward.6} parent=0 // pred_check
    _
  $region7: #{lstm_forward.6} parent=0 // pred_check_branch
    %10 = sbr.rel (0) target = $region9
  $region8: #{lstm_forward.6} parent=0 // pred_region
    _
  $region9: #{lstm_forward.6} parent=0 // pred_fallthru
    _
  %p11 = scmp.eq.s32.totalorder 0, 0
  // Predicated region
  $region10: #{lstm_forward.6} parent=0 // pred_check
    %p12 = pneg %p11
  $region11: #{lstm_forward.6} parent=0 // pred_check_branch
    %14 = sbr.rel (%p12) target = $region13
  $region12: #{lstm_forward.6} parent=0 // pred_region
    %vm15 = vcmask 261120
    %16 = vst.msk [vmem:[#allocation2] sm:$0xff] %vm15, 0.0
    %17 = vst.msk [vmem:[#allocation3] sm:$0xff] %vm15, 0.0
  $region13: #{lstm_forward.6} parent=0 // pred_fallthru
    _
  %v18 = vld [vmem:[#allocation2] sm:$0xff]
  %v19 = vld [vmem:[#allocation3] sm:$0xff]
  %v20 = vld [vmem:[%s1] sm:$0xff]
  %v21 = vld [vmem:[%s1 + $0x8] sm:$0xff]
  %v22 = vld [vmem:[%s1 + $0x10] sm:$0xff]
  %v23 = vld [vmem:[%s1 + $0x18] sm:$0xff]
  %v24 = vld [vmem:[%s0] sm:$0xff]
  %vm25 = vcmask 261120
  %v27 = vsel %vm25, %v18, 0
  %29 = vmatprep.subr.mxu0 0.0
  %30 = vmatpush1.msra.mxu0 %v20
  %31 = vmatprep.subr.mxu0 0.0
  %32 = vmatpush1.msra.mxu0 %v21
  %33 = vmatprep.subr.mxu0 0.0
  %34 = vmatpush1.msra.mxu0 %v22
  %35 = vmatprep.subr.mxu0 0.0
  %36 = vmatpush1.msra.mxu0 %v23
  %37 = vmatprep.subr.mxu0 0.0
  %38 = vmatpush1.msra.mxu0 0.0
  %39 = vmatprep.subr.mxu0 0.0
  %40 = vmatpush1.msra.mxu0 0.0
  %41 = vmatprep.subr.mxu0 0.0
  %42 = vmatpush1.msra.mxu0 0.0
  %43 = vmatprep.subr.mxu0 0.0
  %44 = vmatpush1.msra.mxu0 0.0
  %45 = vmatprep.subr.mxu0 0.0
  %46 = vmatpush1.msra.mxu0 0.0
  %47 = vmatprep.subr.mxu0 0.0
  %48 = vmatpush1.msra.mxu0 0.0
  %49 = vmatprep.subr.mxu0 0.0
  %50 = vmatpush1.msra.mxu0 0.0
  %51 = vmatprep.subr.mxu0 0.0
  %52 = vmatpush1.msra.mxu0 0.0
  %53 = vmatprep.subr.mxu0 0.0
  %54 = vmatpush1.msra.mxu0 0.0
  %55 = vmatprep.subr.mxu0 0.0
  %56 = vmatpush1.msra.mxu0 0.0
  %57 = vmatprep.subr.mxu0 0.0
  %58 = vmatpush1.msra.mxu0 0.0
  %59 = vmatprep.subr.mxu0 0.0
  %60 = vmatpush1.msra.mxu0 0.0
  %61 = vmatprep.subr.mxu0 0.0
  %62 = vmatpush1.msra.mxu0 0.0
  %63 = vmatprep.subr.mxu0 0.0
  %64 = vmatpush1.msra.mxu0 0.0
  %65 = vmatprep.subr.mxu0 0.0
  %66 = vmatpush1.msra.mxu0 0.0
  %67 = vmatprep.subr.mxu0 0.0
  %68 = vmatpush1.msra.mxu0 0.0
  %69 = vmatprep.subr.mxu0 0.0
  %70 = vmatpush1.msra.mxu0 0.0
  %71 = vmatprep.subr.mxu0 0.0
  %72 = vmatpush1.msra.mxu0 0.0
  %73 = vmatprep.subr.mxu0 0.0
  %74 = vmatpush1.msra.mxu0 0.0
  %75 = vmatprep.subr.mxu0 0.0
  %76 = vmatpush1.msra.mxu0 0.0
  %77 = vmatprep.subr.mxu0 0.0
  %78 = vmatpush1.msra.mxu0 0.0
  %79 = vmatprep.subr.mxu0 0.0
  %80 = vmatpush1.msra.mxu0 0.0
  %81 = vmatprep.subr.mxu0 0.0
  %82 = vmatpush1.msra.mxu0 0.0
  %83 = vmatprep.subr.mxu0 0.0
  %84 = vmatpush1.msra.mxu0 0.0
  %85 = vmatprep.subr.mxu0 0.0
  %86 = vmatpush1.msra.mxu0 0.0
  %87 = vmatprep.subr.mxu0 0.0
  %88 = vmatpush1.msra.mxu0 0.0
  %89 = vmatprep.subr.mxu0 0.0
  %90 = vmatpush1.msra.mxu0 0.0
  %91 = vmatprep.subr.mxu0 0.0
  %92 = vmatpush1.msra.mxu0 0.0
  %93 = vmatprep.mubr.f32.mxu0 0.0
  %94 = vmatmul.mubr.f32.gmra.mrb[0].mxu0 %v27
  %v95 = vpop.f32.mrb[0].mxu0
  %v96 = vadd.f32 0.0, %v95
  %v97 = vpop.f32.mrb[0].mxu0
  %98 = vdwg.mxu0
  %v99 = vadd.f32 %v24, %v96
  %v100 = vxor.u32 %v99, 2147483648
  %v101 = vmul.f32 %v100, 1.442695
  %v102 = vpow.pop %v101
  %v103 = vadd.f32 %v102, 1.0
  %v104 = vrcp.pop %v103
  %v105 = vmul.f32 1.0, %v104
  %v106 = vtanh.pop %v99
  %108 = vrot.lane.b32.xlu0 %v19, 32
  %v109 = vpop.permute.xlu0 %108
  %v111 = vmul.f32 %v105, %v109
  %113 = vrot.lane.b32.xlu0 %v106, 64
  %v114 = vpop.permute.xlu0 %113
  %v116 = vmul.f32 %v105, %v114
  %118 = vrot.lane.b32.xlu0 %v116, 32
  %v119 = vpop.permute.xlu0 %118
  %v121 = vadd.f32 %v111, %v119
  %v122 = vtanh.pop %v121
  %124 = vrot.lane.b32.xlu0 %v122, 64
  %v125 = vpop.permute.xlu0 %124
  %v127 = vmul.f32 %v105, %v125
  %129 = vrot.lane.b32.xlu0 %v127, 32
  %v130 = vpop.permute.xlu0 %129
  %132 = vst.msk [vmem:[%s2] sm:$0xff] %vm25, %v130
  %v133 = vld [vmem:[%s0 + $0x8] sm:$0xff]
  %v134 = vsel %vm25, %v130, 0
  %136 = vmatprep.subr.mxu0 0.0
  %137 = vmatpush1.msra.mxu0 %v20
  %138 = vmatprep.subr.mxu0 0.0
  %139 = vmatpush1.msra.mxu0 %v21
  %140 = vmatprep.subr.mxu0 0.0
  %141 = vmatpush1.msra.mxu0 %v22
  %142 = vmatprep.subr.mxu0 0.0
  %143 = vmatpush1.msra.mxu0 %v23
  %144 = vmatprep.subr.mxu0 0.0
  %145 = vmatpush1.msra.mxu0 0.0
  %146 = vmatprep.subr.mxu0 0.0
  %147 = vmatpush1.msra.mxu0 0.0
  %148 = vmatprep.subr.mxu0 0.0
  %149 = vmatpush1.msra.mxu0 0.0
  %150 = vmatprep.subr.mxu0 0.0
  %151 = vmatpush1.msra.mxu0 0.0
  %152 = vmatprep.subr.mxu0 0.0
  %153 = vmatpush1.msra.mxu0 0.0
  %154 = vmatprep.subr.mxu0 0.0
  %155 = vmatpush1.msra.mxu0 0.0
  %156 = vmatprep.subr.mxu0 0.0
  %157 = vmatpush1.msra.mxu0 0.0
  %158 = vmatprep.subr.mxu0 0.0
  %159 = vmatpush1.msra.mxu0 0.0
  %160 = vmatprep.subr.mxu0 0.0
  %161 = vmatpush1.msra.mxu0 0.0
  %162 = vmatprep.subr.mxu0 0.0
  %163 = vmatpush1.msra.mxu0 0.0
  %164 = vmatprep.subr.mxu0 0.0
  %165 = vmatpush1.msra.mxu0 0.0
  %166 = vmatprep.subr.mxu0 0.0
  %167 = vmatpush1.msra.mxu0 0.0
  %168 = vmatprep.subr.mxu0 0.0
  %169 = vmatpush1.msra.mxu0 0.0
  %170 = vmatprep.subr.mxu0 0.0
  %171 = vmatpush1.msra.mxu0 0.0
  %172 = vmatprep.subr.mxu0 0.0
  %173 = vmatpush1.msra.mxu0 0.0
  %174 = vmatprep.subr.mxu0 0.0
  %175 = vmatpush1.msra.mxu0 0.0
  %176 = vmatprep.subr.mxu0 0.0
  %177 = vmatpush1.msra.mxu0 0.0
  %178 = vmatprep.subr.mxu0 0.0
  %179 = vmatpush1.msra.mxu0 0.0
  %180 = vmatprep.subr.mxu0 0.0
  %181 = vmatpush1.msra.mxu0 0.0
  %182 = vmatprep.subr.mxu0 0.0
  %183 = vmatpush1.msra.mxu0 0.0
  %184 = vmatprep.subr.mxu0 0.0
  %185 = vmatpush1.msra.mxu0 0.0
  %186 = vmatprep.subr.mxu0 0.0
  %187 = vmatpush1.msra.mxu0 0.0
  %188 = vmatprep.subr.mxu0 0.0
  %189 = vmatpush1.msra.mxu0 0.0
  %190 = vmatprep.subr.mxu0 0.0
  %191 = vmatpush1.msra.mxu0 0.0
  %192 = vmatprep.subr.mxu0 0.0
  %193 = vmatpush1.msra.mxu0 0.0
  %194 = vmatprep.subr.mxu0 0.0
  %195 = vmatpush1.msra.mxu0 0.0
  %196 = vmatprep.subr.mxu0 0.0
  %197 = vmatpush1.msra.mxu0 0.0
  %198 = vmatprep.subr.mxu0 0.0
  %199 = vmatpush1.msra.mxu0 0.0
  %200 = vmatprep.mubr.f32.mxu0 0.0
  %201 = vmatmul.mubr.f32.gmra.mrb[0].mxu0 %v134
  %v202 = vpop.f32.mrb[0].mxu0
  %v203 = vadd.f32 0.0, %v202
  %v204 = vpop.f32.mrb[0].mxu0
  %205 = vdwg.mxu0
  %v206 = vadd.f32 %v133, %v203
  %v207 = vxor.u32 %v206, 2147483648
  %v208 = vmul.f32 %v207, 1.442695
  %v209 = vpow.pop %v208
  %v210 = vadd.f32 %v209, 1.0
  %v211 = vrcp.pop %v210
  %v212 = vmul.f32 1.0, %v211
  %v213 = vtanh.pop %v206
  %v214 = vmul.f32 %v212, %v121
  %216 = vrot.lane.b32.xlu0 %v213, 64
  %v217 = vpop.permute.xlu0 %216
  %v219 = vmul.f32 %v212, %v217
  %221 = vrot.lane.b32.xlu0 %v219, 32
  %v222 = vpop.permute.xlu0 %221
  %v224 = vadd.f32 %v214, %v222
  %v225 = vtanh.pop %v224
  %227 = vrot.lane.b32.xlu0 %v225, 64
  %v228 = vpop.permute.xlu0 %227
  %v230 = vmul.f32 %v212, %v228
  %232 = vrot.lane.b32.xlu0 %v230, 32
  %v233 = vpop.permute.xlu0 %232
  %235 = vst.msk [vmem:[%s2 + $0x8] sm:$0xff] %vm25, %v233
  %v236 = vld [vmem:[%s0 + $0x10] sm:$0xff]
  %v237 = vsel %vm25, %v233, 0
  %239 = vmatprep.subr.mxu0 0.0
  %240 = vmatpush1.msra.mxu0 %v20
  %241 = vmatprep.subr.mxu0 0.0
  %242 = vmatpush1.msra.mxu0 %v21
  %243 = vmatprep.subr.mxu0 0.0
  %244 = vmatpush1.msra.mxu0 %v22
  %245 = vmatprep.subr.mxu0 0.0
  %246 = vmatpush1.msra.mxu0 %v23
  %247 = vmatprep.subr.mxu0 0.0
  %248 = vmatpush1.msra.mxu0 0.0
  %249 = vmatprep.subr.mxu0 0.0
  %250 = vmatpush1.msra.mxu0 0.0
  %251 = vmatprep.subr.mxu0 0.0
  %252 = vmatpush1.msra.mxu0 0.0
  %253 = vmatprep.subr.mxu0 0.0
  %254 = vmatpush1.msra.mxu0 0.0
  %255 = vmatprep.subr.mxu0 0.0
  %256 = vmatpush1.msra.mxu0 0.0
  %257 = vmatprep.subr.mxu0 0.0
  %258 = vmatpush1.msra.mxu0 0.0
  %259 = vmatprep.subr.mxu0 0.0
  %260 = vmatpush1.msra.mxu0 0.0
  %261 = vmatprep.subr.mxu0 0.0
  %262 = vmatpush1.msra.mxu0 0.0
  %263 = vmatprep.subr.mxu0 0.0
  %264 = vmatpush1.msra.mxu0 0.0
  %265 = vmatprep.subr.mxu0 0.0
  %266 = vmatpush1.msra.mxu0 0.0
  %267 = vmatprep.subr.mxu0 0.0
  %268 = vmatpush1.msra.mxu0 0.0
  %269 = vmatprep.subr.mxu0 0.0
  %270 = vmatpush1.msra.mxu0 0.0
  %271 = vmatprep.subr.mxu0 0.0
  %272 = vmatpush1.msra.mxu0 0.0
  %273 = vmatprep.subr.mxu0 0.0
  %274 = vmatpush1.msra.mxu0 0.0
  %275 = vmatprep.subr.mxu0 0.0
  %276 = vmatpush1.msra.mxu0 0.0
  %277 = vmatprep.subr.mxu0 0.0
  %278 = vmatpush1.msra.mxu0 0.0
  %279 = vmatprep.subr.mxu0 0.0
  %280 = vmatpush1.msra.mxu0 0.0
  %281 = vmatprep.subr.mxu0 0.0
  %282 = vmatpush1.msra.mxu0 0.0
  %283 = vmatprep.subr.mxu0 0.0
  %284 = vmatpush1.msra.mxu0 0.0
  %285 = vmatprep.subr.mxu0 0.0
  %286 = vmatpush1.msra.mxu0 0.0
  %287 = vmatprep.subr.mxu0 0.0
  %288 = vmatpush1.msra.mxu0 0.0
  %289 = vmatprep.subr.mxu0 0.0
  %290 = vmatpush1.msra.mxu0 0.0
  %291 = vmatprep.subr.mxu0 0.0
  %292 = vmatpush1.msra.mxu0 0.0
  %293 = vmatprep.subr.mxu0 0.0
  %294 = vmatpush1.msra.mxu0 0.0
  %295 = vmatprep.subr.mxu0 0.0
  %296 = vmatpush1.msra.mxu0 0.0
  %297 = vmatprep.subr.mxu0 0.0
  %298 = vmatpush1.msra.mxu0 0.0
  %299 = vmatprep.subr.mxu0 0.0
  %300 = vmatpush1.msra.mxu0 0.0
  %301 = vmatprep.subr.mxu0 0.0
  %302 = vmatpush1.msra.mxu0 0.0
  %303 = vmatprep.mubr.f32.mxu0 0.0
  %304 = vmatmul.mubr.f32.gmra.mrb[0].mxu0 %v237
  %v305 = vpop.f32.mrb[0].mxu0
  %v306 = vadd.f32 0.0, %v305
  %v307 = vpop.f32.mrb[0].mxu0
  %308 = vdwg.mxu0
  %v309 = vadd.f32 %v236, %v306
  %v310 = vxor.u32 %v309, 2147483648
  %v311 = vmul.f32 %v310, 1.442695
  %v312 = vpow.pop %v311
  %v313 = vadd.f32 %v312, 1.0
  %v314 = vrcp.pop %v313
  %v315 = vmul.f32 1.0, %v314
  %v316 = vtanh.pop %v309
  %v317 = vmul.f32 %v315, %v224
  %319 = vrot.lane.b32.xlu0 %v316, 64
  %v320 = vpop.permute.xlu0 %319
  %v322 = vmul.f32 %v315, %v320
  %324 = vrot.lane.b32.xlu0 %v322, 32
  %v325 = vpop.permute.xlu0 %324
  %v327 = vadd.f32 %v317, %v325
  %v328 = vtanh.pop %v327
  %330 = vrot.lane.b32.xlu0 %v328, 64
  %v331 = vpop.permute.xlu0 %330
  %v333 = vmul.f32 %v315, %v331
  %335 = vrot.lane.b32.xlu0 %v333, 32
  %v336 = vpop.permute.xlu0 %335
  %338 = vst.msk [vmem:[%s2 + $0x10] sm:$0xff] %vm25, %v336
  %v339 = vld [vmem:[%s0 + $0x18] sm:$0xff]
  %v340 = vsel %vm25, %v336, 0
  %342 = vmatprep.subr.mxu0 0.0
  %343 = vmatpush1.msra.mxu0 %v20
  %344 = vmatprep.subr.mxu0 0.0
  %345 = vmatpush1.msra.mxu0 %v21
  %346 = vmatprep.subr.mxu0 0.0
  %347 = vmatpush1.msra.mxu0 %v22
  %348 = vmatprep.subr.mxu0 0.0
  %349 = vmatpush1.msra.mxu0 %v23
  %350 = vmatprep.subr.mxu0 0.0
  %351 = vmatpush1.msra.mxu0 0.0
  %352 = vmatprep.subr.mxu0 0.0
  %353 = vmatpush1.msra.mxu0 0.0
  %354 = vmatprep.subr.mxu0 0.0
  %355 = vmatpush1.msra.mxu0 0.0
  %356 = vmatprep.subr.mxu0 0.0
  %357 = vmatpush1.msra.mxu0 0.0
  %358 = vmatprep.subr.mxu0 0.0
  %359 = vmatpush1.msra.mxu0 0.0
  %360 = vmatprep.subr.mxu0 0.0
  %361 = vmatpush1.msra.mxu0 0.0
  %362 = vmatprep.subr.mxu0 0.0
  %363 = vmatpush1.msra.mxu0 0.0
  %364 = vmatprep.subr.mxu0 0.0
  %365 = vmatpush1.msra.mxu0 0.0
  %366 = vmatprep.subr.mxu0 0.0
  %367 = vmatpush1.msra.mxu0 0.0
  %368 = vmatprep.subr.mxu0 0.0
  %369 = vmatpush1.msra.mxu0 0.0
  %370 = vmatprep.subr.mxu0 0.0
  %371 = vmatpush1.msra.mxu0 0.0
  %372 = vmatprep.subr.mxu0 0.0
  %373 = vmatpush1.msra.mxu0 0.0
  %374 = vmatprep.subr.mxu0 0.0
  %375 = vmatpush1.msra.mxu0 0.0
  %376 = vmatprep.subr.mxu0 0.0
  %377 = vmatpush1.msra.mxu0 0.0
  %378 = vmatprep.subr.mxu0 0.0
  %379 = vmatpush1.msra.mxu0 0.0
  %380 = vmatprep.subr.mxu0 0.0
  %381 = vmatpush1.msra.mxu0 0.0
  %382 = vmatprep.subr.mxu0 0.0
  %383 = vmatpush1.msra.mxu0 0.0
  %384 = vmatprep.subr.mxu0 0.0
  %385 = vmatpush1.msra.mxu0 0.0
  %386 = vmatprep.subr.mxu0 0.0
  %387 = vmatpush1.msra.mxu0 0.0
  %388 = vmatprep.subr.mxu0 0.0
  %389 = vmatpush1.msra.mxu0 0.0
  %390 = vmatprep.subr.mxu0 0.0
  %391 = vmatpush1.msra.mxu0 0.0
  %392 = vmatprep.subr.mxu0 0.0
  %393 = vmatpush1.msra.mxu0 0.0
  %394 = vmatprep.subr.mxu0 0.0
  %395 = vmatpush1.msra.mxu0 0.0
  %396 = vmatprep.subr.mxu0 0.0
  %397 = vmatpush1.msra.mxu0 0.0
  %398 = vmatprep.subr.mxu0 0.0
  %399 = vmatpush1.msra.mxu0 0.0
  %400 = vmatprep.subr.mxu0 0.0
  %401 = vmatpush1.msra.mxu0 0.0
  %402 = vmatprep.subr.mxu0 0.0
  %403 = vmatpush1.msra.mxu0 0.0
  %404 = vmatprep.subr.mxu0 0.0
  %405 = vmatpush1.msra.mxu0 0.0
  %406 = vmatprep.mubr.f32.mxu0 0.0
  %407 = vmatmul.mubr.f32.gmra.mrb[0].mxu0 %v340
  %v408 = vpop.f32.mrb[0].mxu0
  %v409 = vadd.f32 0.0, %v408
  %v410 = vpop.f32.mrb[0].mxu0
  %411 = vdwg.mxu0
  %v412 = vadd.f32 %v339, %v409
  %v413 = vxor.u32 %v412, 2147483648
  %v414 = vmul.f32 %v413, 1.442695
  %v415 = vpow.pop %v414
  %v416 = vadd.f32 %v415, 1.0
  %v417 = vrcp.pop %v416
  %v418 = vmul.f32 1.0, %v417
  %v419 = vtanh.pop %v412
  %v420 = vmul.f32 %v418, %v327
  %422 = vrot.lane.b32.xlu0 %v419, 64
  %v423 = vpop.permute.xlu0 %422
  %v425 = vmul.f32 %v418, %v423
  %427 = vrot.lane.b32.xlu0 %v425, 32
  %v428 = vpop.permute.xlu0 %427
  %v430 = vadd.f32 %v420, %v428
  %v431 = vtanh.pop %v430
  %433 = vrot.lane.b32.xlu0 %v431, 64
  %v434 = vpop.permute.xlu0 %433
  %v436 = vmul.f32 %v418, %v434
  %438 = vrot.lane.b32.xlu0 %v436, 32
  %v439 = vpop.permute.xlu0 %438
  %441 = vst.msk [vmem:[%s2 + $0x18] sm:$0xff] %vm25, %v439
  %v442 = vld [vmem:[%s0 + $0x20] sm:$0xff]
  %v443 = vsel %vm25, %v439, 0
  %445 = vmatprep.subr.mxu0 0.0
  %446 = vmatpush1.msra.mxu0 %v20
  %447 = vmatprep.subr.mxu0 0.0
  %448 = vmatpush1.msra.mxu0 %v21
  %449 = vmatprep.subr.mxu0 0.0
  %450 = vmatpush1.msra.mxu0 %v22
  %451 = vmatprep.subr.mxu0 0.0
  %452 = vmatpush1.msra.mxu0 %v23
  %453 = vmatprep.subr.mxu0 0.0
  %454 = vmatpush1.msra.mxu0 0.0
  %455 = vmatprep.subr.mxu0 0.0
  %456 = vmatpush1.msra.mxu0 0.0
  %457 = vmatprep.subr.mxu0 0.0
  %458 = vmatpush1.msra.mxu0 0.0
  %459 = vmatprep.subr.mxu0 0.0
  %460 = vmatpush1.msra.mxu0 0.0
  %461 = vmatprep.subr.mxu0 0.0
  %462 = vmatpush1.msra.mxu0 0.0
  %463 = vmatprep.subr.mxu0 0.0
  %464 = vmatpush1.msra.mxu0 0.0
  %465 = vmatprep.subr.mxu0 0.0
  %466 = vmatpush1.msra.mxu0 0.0
  %467 = vmatprep.subr.mxu0 0.0
  %468 = vmatpush1.msra.mxu0 0.0
  %469 = vmatprep.subr.mxu0 0.0
  %470 = vmatpush1.msra.mxu0 0.0
  %471 = vmatprep.subr.mxu0 0.0
  %472 = vmatpush1.msra.mxu0 0.0
  %473 = vmatprep.subr.mxu0 0.0
  %474 = vmatpush1.msra.mxu0 0.0
  %475 = vmatprep.subr.mxu0 0.0
  %476 = vmatpush1.msra.mxu0 0.0
  %477 = vmatprep.subr.mxu0 0.0
  %478 = vmatpush1.msra.mxu0 0.0
  %479 = vmatprep.subr.mxu0 0.0
  %480 = vmatpush1.msra.mxu0 0.0
  %481 = vmatprep.subr.mxu0 0.0
  %482 = vmatpush1.msra.mxu0 0.0
  %483 = vmatprep.subr.mxu0 0.0
  %484 = vmatpush1.msra.mxu0 0.0
  %485 = vmatprep.subr.mxu0 0.0
  %486 = vmatpush1.msra.mxu0 0.0
  %487 = vmatprep.subr.mxu0 0.0
  %488 = vmatpush1.msra.mxu0 0.0
  %489 = vmatprep.subr.mxu0 0.0
  %490 = vmatpush1.msra.mxu0 0.0
  %491 = vmatprep.subr.mxu0 0.0
  %492 = vmatpush1.msra.mxu0 0.0
  %493 = vmatprep.subr.mxu0 0.0
  %494 = vmatpush1.msra.mxu0 0.0
  %495 = vmatprep.subr.mxu0 0.0
  %496 = vmatpush1.msra.mxu0 0.0
  %497 = vmatprep.subr.mxu0 0.0
  %498 = vmatpush1.msra.mxu0 0.0
  %499 = vmatprep.subr.mxu0 0.0
  %500 = vmatpush1.msra.mxu0 0.0
  %501 = vmatprep.subr.mxu0 0.0
  %502 = vmatpush1.msra.mxu0 0.0
  %503 = vmatprep.subr.mxu0 0.0
  %504 = vmatpush1.msra.mxu0 0.0
  %505 = vmatprep.subr.mxu0 0.0
  %506 = vmatpush1.msra.mxu0 0.0
  %507 = vmatprep.subr.mxu0 0.0
  %508 = vmatpush1.msra.mxu0 0.0
  %509 = vmatprep.mubr.f32.mxu0 0.0
  %510 = vmatmul.mubr.f32.gmra.mrb[0].mxu0 %v443
  %v511 = vpop.f32.mrb[0].mxu0
  %v512 = vadd.f32 0.0, %v511
  %v513 = vpop.f32.mrb[0].mxu0
  %514 = vdwg.mxu0
  %v515 = vadd.f32 %v442, %v512
  %v516 = vxor.u32 %v515, 2147483648
  %v517 = vmul.f32 %v516, 1.442695
  %v518 = vpow.pop %v517
  %v519 = vadd.f32 %v518, 1.0
  %v520 = vrcp.pop %v519
  %v521 = vmul.f32 1.0, %v520
  %v522 = vtanh.pop %v515
  %v523 = vmul.f32 %v521, %v430
  %525 = vrot.lane.b32.xlu0 %v522, 64
  %v526 = vpop.permute.xlu0 %525
  %v528 = vmul.f32 %v521, %v526
  %530 = vrot.lane.b32.xlu0 %v528, 32
  %v531 = vpop.permute.xlu0 %530
  %v533 = vadd.f32 %v523, %v531
  %v534 = vtanh.pop %v533
  %536 = vrot.lane.b32.xlu0 %v534, 64
  %v537 = vpop.permute.xlu0 %536
  %v539 = vmul.f32 %v521, %v537
  %541 = vrot.lane.b32.xlu0 %v539, 32
  %v542 = vpop.permute.xlu0 %541
  %544 = vst.msk [vmem:[%s2 + $0x20] sm:$0xff] %vm25, %v542
  %v545 = vld [vmem:[%s0 + $0x28] sm:$0xff]
  %v546 = vsel %vm25, %v542, 0
  %548 = vmatprep.subr.mxu0 0.0
  %549 = vmatpush1.msra.mxu0 %v20
  %550 = vmatprep.subr.mxu0 0.0
  %551 = vmatpush1.msra.mxu0 %v21
  %552 = vmatprep.subr.mxu0 0.0
  %553 = vmatpush1.msra.mxu0 %v22
  %554 = vmatprep.subr.mxu0 0.0
  %555 = vmatpush1.msra.mxu0 %v23
  %556 = vmatprep.subr.mxu0 0.0
  %557 = vmatpush1.msra.mxu0 0.0
  %558 = vmatprep.subr.mxu0 0.0
  %559 = vmatpush1.msra.mxu0 0.0
  %560 = vmatprep.subr.mxu0 0.0
  %561 = vmatpush1.msra.mxu0 0.0
  %562 = vmatprep.subr.mxu0 0.0
  %563 = vmatpush1.msra.mxu0 0.0
  %564 = vmatprep.subr.mxu0 0.0
  %565 = vmatpush1.msra.mxu0 0.0
  %566 = vmatprep.subr.mxu0 0.0
  %567 = vmatpush1.msra.mxu0 0.0
  %568 = vmatprep.subr.mxu0 0.0
  %569 = vmatpush1.msra.mxu0 0.0
  %570 = vmatprep.subr.mxu0 0.0
  %571 = vmatpush1.msra.mxu0 0.0
  %572 = vmatprep.subr.mxu0 0.0
  %573 = vmatpush1.msra.mxu0 0.0
  %574 = vmatprep.subr.mxu0 0.0
  %575 = vmatpush1.msra.mxu0 0.0
  %576 = vmatprep.subr.mxu0 0.0
  %577 = vmatpush1.msra.mxu0 0.0
  %578 = vmatprep.subr.mxu0 0.0
  %579 = vmatpush1.msra.mxu0 0.0
  %580 = vmatprep.subr.mxu0 0.0
  %581 = vmatpush1.msra.mxu0 0.0
  %582 = vmatprep.subr.mxu0 0.0
  %583 = vmatpush1.msra.mxu0 0.0
  %584 = vmatprep.subr.mxu0 0.0
  %585 = vmatpush1.msra.mxu0 0.0
  %586 = vmatprep.subr.mxu0 0.0
  %587 = vmatpush1.msra.mxu0 0.0
  %588 = vmatprep.subr.mxu0 0.0
  %589 = vmatpush1.msra.mxu0 0.0
  %590 = vmatprep.subr.mxu0 0.0
  %591 = vmatpush1.msra.mxu0 0.0
  %592 = vmatprep.subr.mxu0 0.0
  %593 = vmatpush1.msra.mxu0 0.0
  %594 = vmatprep.subr.mxu0 0.0
  %595 = vmatpush1.msra.mxu0 0.0
  %596 = vmatprep.subr.mxu0 0.0
  %597 = vmatpush1.msra.mxu0 0.0
  %598 = vmatprep.subr.mxu0 0.0
  %599 = vmatpush1.msra.mxu0 0.0
  %600 = vmatprep.subr.mxu0 0.0
  %601 = vmatpush1.msra.mxu0 0.0
  %602 = vmatprep.subr.mxu0 0.0
  %603 = vmatpush1.msra.mxu0 0.0
  %604 = vmatprep.subr.mxu0 0.0
  %605 = vmatpush1.msra.mxu0 0.0
  %606 = vmatprep.subr.mxu0 0.0
  %607 = vmatpush1.msra.mxu0 0.0
  %608 = vmatprep.subr.mxu0 0.0
  %609 = vmatpush1.msra.mxu0 0.0
  %610 = vmatprep.subr.mxu0 0.0
  %611 = vmatpush1.msra.mxu0 0.0
  %612 = vmatprep.mubr.f32.mxu0 0.0
  %613 = vmatmul.mubr.f32.gmra.mrb[0].mxu0 %v546
  %v614 = vpop.f32.mrb[0].mxu0
  %v615 = vadd.f32 0.0, %v614
  %v616 = vpop.f32.mrb[0].mxu0
  %617 = vdwg.mxu0
  %v618 = vadd.f32 %v545, %v615
  %v619 = vxor.u32 %v618, 2147483648
  %v620 = vmul.f32 %v619, 1.442695
  %v621 = vpow.pop %v620
  %v622 = vadd.f32 %v621, 1.0
  %v623 = vrcp.pop %v622
  %v624 = vmul.f32 1.0, %v623
  %v625 = vtanh.pop %v618
  %v626 = vmul.f32 %v624, %v533
  %628 = vrot.lane.b32.xlu0 %v625, 64
  %v629 = vpop.permute.xlu0 %628
  %v631 = vmul.f32 %v624, %v629
  %633 = vrot.lane.b32.xlu0 %v631, 32
  %v634 = vpop.permute.xlu0 %633
  %v636 = vadd.f32 %v626, %v634
  %v637 = vtanh.pop %v636
  %639 = vrot.lane.b32.xlu0 %v637, 64
  %v640 = vpop.permute.xlu0 %639
  %v642 = vmul.f32 %v624, %v640
  %644 = vrot.lane.b32.xlu0 %v642, 32
  %v645 = vpop.permute.xlu0 %644
  %647 = vst.msk [vmem:[%s2 + $0x28] sm:$0xff] %vm25, %v645
  %v648 = vld [vmem:[%s0 + $0x30] sm:$0xff]
  %v649 = vsel %vm25, %v645, 0
  %651 = vmatprep.subr.mxu0 0.0
  %652 = vmatpush1.msra.mxu0 %v20
  %653 = vmatprep.subr.mxu0 0.0
  %654 = vmatpush1.msra.mxu0 %v21
  %655 = vmatprep.subr.mxu0 0.0
  %656 = vmatpush1.msra.mxu0 %v22
  %657 = vmatprep.subr.mxu0 0.0
  %658 = vmatpush1.msra.mxu0 %v23
  %659 = vmatprep.subr.mxu0 0.0
  %660 = vmatpush1.msra.mxu0 0.0
  %661 = vmatprep.subr.mxu0 0.0
  %662 = vmatpush1.msra.mxu0 0.0
  %663 = vmatprep.subr.mxu0 0.0
  %664 = vmatpush1.msra.mxu0 0.0
  %665 = vmatprep.subr.mxu0 0.0
  %666 = vmatpush1.msra.mxu0 0.0
  %667 = vmatprep.subr.mxu0 0.0
  %668 = vmatpush1.msra.mxu0 0.0
  %669 = vmatprep.subr.mxu0 0.0
  %670 = vmatpush1.msra.mxu0 0.0
  %671 = vmatprep.subr.mxu0 0.0
  %672 = vmatpush1.msra.mxu0 0.0
  %673 = vmatprep.subr.mxu0 0.0
  %674 = vmatpush1.msra.mxu0 0.0
  %675 = vmatprep.subr.mxu0 0.0
  %676 = vmatpush1.msra.mxu0 0.0
  %677 = vmatprep.subr.mxu0 0.0
  %678 = vmatpush1.msra.mxu0 0.0
  %679 = vmatprep.subr.mxu0 0.0
  %680 = vmatpush1.msra.mxu0 0.0
  %681 = vmatprep.subr.mxu0 0.0
  %682 = vmatpush1.msra.mxu0 0.0
  %683 = vmatprep.subr.mxu0 0.0
  %684 = vmatpush1.msra.mxu0 0.0
  %685 = vmatprep.subr.mxu0 0.0
  %686 = vmatpush1.msra.mxu0 0.0
  %687 = vmatprep.subr.mxu0 0.0
  %688 = vmatpush1.msra.mxu0 0.0
  %689 = vmatprep.subr.mxu0 0.0
  %690 = vmatpush1.msra.mxu0 0.0
  %691 = vmatprep.subr.mxu0 0.0
  %692 = vmatpush1.msra.mxu0 0.0
  %693 = vmatprep.subr.mxu0 0.0
  %694 = vmatpush1.msra.mxu0 0.0
  %695 = vmatprep.subr.mxu0 0.0
  %696 = vmatpush1.msra.mxu0 0.0
  %697 = vmatprep.subr.mxu0 0.0
  %698 = vmatpush1.msra.mxu0 0.0
  %699 = vmatprep.subr.mxu0 0.0
  %700 = vmatpush1.msra.mxu0 0.0
  %701 = vmatprep.subr.mxu0 0.0
  %702 = vmatpush1.msra.mxu0 0.0
  %703 = vmatprep.subr.mxu0 0.0
  %704 = vmatpush1.msra.mxu0 0.0
  %705 = vmatprep.subr.mxu0 0.0
  %706 = vmatpush1.msra.mxu0 0.0
  %707 = vmatprep.subr.mxu0 0.0
  %708 = vmatpush1.msra.mxu0 0.0
  %709 = vmatprep.subr.mxu0 0.0
  %710 = vmatpush1.msra.mxu0 0.0
  %711 = vmatprep.subr.mxu0 0.0
  %712 = vmatpush1.msra.mxu0 0.0
  %713 = vmatprep.subr.mxu0 0.0
  %714 = vmatpush1.msra.mxu0 0.0
  %715 = vmatprep.mubr.f32.mxu0 0.0
  %716 = vmatmul.mubr.f32.gmra.mrb[0].mxu0 %v649
  %v717 = vpop.f32.mrb[0].mxu0
  %v718 = vadd.f32 0.0, %v717
  %v719 = vpop.f32.mrb[0].mxu0
  %720 = vdwg.mxu0
  %v721 = vadd.f32 %v648, %v718
  %v722 = vxor.u32 %v721, 2147483648
  %v723 = vmul.f32 %v722, 1.442695
  %v724 = vpow.pop %v723
  %v725 = vadd.f32 %v724, 1.0
  %v726 = vrcp.pop %v725
  %v727 = vmul.f32 1.0, %v726
  %v728 = vtanh.pop %v721
  %v729 = vmul.f32 %v727, %v636
  %731 = vrot.lane.b32.xlu0 %v728, 64
  %v732 = vpop.permute.xlu0 %731
  %v734 = vmul.f32 %v727, %v732
  %736 = vrot.lane.b32.xlu0 %v734, 32
  %v737 = vpop.permute.xlu0 %736
  %v739 = vadd.f32 %v729, %v737
  %v740 = vtanh.pop %v739
  %742 = vrot.lane.b32.xlu0 %v740, 64
  %v743 = vpop.permute.xlu0 %742
  %v745 = vmul.f32 %v727, %v743
  %747 = vrot.lane.b32.xlu0 %v745, 32
  %v748 = vpop.permute.xlu0 %747
  %750 = vst.msk [vmem:[%s2 + $0x30] sm:$0xff] %vm25, %v748
  %v751 = vld [vmem:[%s0 + $0x38] sm:$0xff]
  %v752 = vsel %vm25, %v748, 0
  %754 = vmatprep.subr.mxu0 0.0
  %755 = vmatpush1.msra.mxu0 %v20
  %756 = vmatprep.subr.mxu0 0.0
  %757 = vmatpush1.msra.mxu0 %v21
  %758 = vmatprep.subr.mxu0 0.0
  %759 = vmatpush1.msra.mxu0 %v22
  %760 = vmatprep.subr.mxu0 0.0
  %761 = vmatpush1.msra.mxu0 %v23
  %762 = vmatprep.subr.mxu0 0.0
  %763 = vmatpush1.msra.mxu0 0.0
  %764 = vmatprep.subr.mxu0 0.0
  %765 = vmatpush1.msra.mxu0 0.0
  %766 = vmatprep.subr.mxu0 0.0
  %767 = vmatpush1.msra.mxu0 0.0
  %768 = vmatprep.subr.mxu0 0.0
  %769 = vmatpush1.msra.mxu0 0.0
  %770 = vmatprep.subr.mxu0 0.0
  %771 = vmatpush1.msra.mxu0 0.0
  %772 = vmatprep.subr.mxu0 0.0
  %773 = vmatpush1.msra.mxu0 0.0
  %774 = vmatprep.subr.mxu0 0.0
  %775 = vmatpush1.msra.mxu0 0.0
  %776 = vmatprep.subr.mxu0 0.0
  %777 = vmatpush1.msra.mxu0 0.0
  %778 = vmatprep.subr.mxu0 0.0
  %779 = vmatpush1.msra.mxu0 0.0
  %780 = vmatprep.subr.mxu0 0.0
  %781 = vmatpush1.msra.mxu0 0.0
  %782 = vmatprep.subr.mxu0 0.0
  %783 = vmatpush1.msra.mxu0 0.0
  %784 = vmatprep.subr.mxu0 0.0
  %785 = vmatpush1.msra.mxu0 0.0
  %786 = vmatprep.subr.mxu0 0.0
  %787 = vmatpush1.msra.mxu0 0.0
  %788 = vmatprep.subr.mxu0 0.0
  %789 = vmatpush1.msra.mxu0 0.0
  %790 = vmatprep.subr.mxu0 0.0
  %791 = vmatpush1.msra.mxu0 0.0
  %792 = vmatprep.subr.mxu0 0.0
  %793 = vmatpush1.msra.mxu0 0.0
  %794 = vmatprep.subr.mxu0 0.0
  %795 = vmatpush1.msra.mxu0 0.0
  %796 = vmatprep.subr.mxu0 0.0
  %797 = vmatpush1.msra.mxu0 0.0
  %798 = vmatprep.subr.mxu0 0.0
  %799 = vmatpush1.msra.mxu0 0.0
  %800 = vmatprep.subr.mxu0 0.0
  %801 = vmatpush1.msra.mxu0 0.0
  %802 = vmatprep.subr.mxu0 0.0
  %803 = vmatpush1.msra.mxu0 0.0
  %804 = vmatprep.subr.mxu0 0.0
  %805 = vmatpush1.msra.mxu0 0.0
  %806 = vmatprep.subr.mxu0 0.0
  %807 = vmatpush1.msra.mxu0 0.0
  %808 = vmatprep.subr.mxu0 0.0
  %809 = vmatpush1.msra.mxu0 0.0
  %810 = vmatprep.subr.mxu0 0.0
  %811 = vmatpush1.msra.mxu0 0.0
  %812 = vmatprep.subr.mxu0 0.0
  %813 = vmatpush1.msra.mxu0 0.0
  %814 = vmatprep.subr.mxu0 0.0
  %815 = vmatpush1.msra.mxu0 0.0
  %816 = vmatprep.subr.mxu0 0.0
  %817 = vmatpush1.msra.mxu0 0.0
  %818 = vmatprep.mubr.f32.mxu0 0.0
  %819 = vmatmul.mubr.f32.gmra.mrb[0].mxu0 %v752
  %v820 = vpop.f32.mrb[0].mxu0
  %v821 = vadd.f32 0.0, %v820
  %v822 = vpop.f32.mrb[0].mxu0
  %823 = vdwg.mxu0
  %v824 = vadd.f32 %v751, %v821
  %v825 = vxor.u32 %v824, 2147483648
  %v826 = vmul.f32 %v825, 1.442695
  %v827 = vpow.pop %v826
  %v828 = vadd.f32 %v827, 1.0
  %v829 = vrcp.pop %v828
  %v830 = vmul.f32 1.0, %v829
  %v831 = vtanh.pop %v824
  %v832 = vmul.f32 %v830, %v739
  %834 = vrot.lane.b32.xlu0 %v831, 64
  %v835 = vpop.permute.xlu0 %834
  %v837 = vmul.f32 %v830, %v835
  %839 = vrot.lane.b32.xlu0 %v837, 32
  %v840 = vpop.permute.xlu0 %839
  %v842 = vadd.f32 %v832, %v840
  %v843 = vtanh.pop %v842
  %845 = vrot.lane.b32.xlu0 %v843, 64
  %v846 = vpop.permute.xlu0 %845
  %v848 = vmul.f32 %v830, %v846
  %850 = vrot.lane.b32.xlu0 %v848, 32
  %v851 = vpop.permute.xlu0 %850
  %853 = vst.msk [vmem:[%s2 + $0x38] sm:$0xff] %vm25, %v851
  %854 = vst.msk [vmem:[#allocation2] sm:$0xff] %vm25, %v851
  %856 = vrot.lane.b32.xlu0 %v842, 96
  %v857 = vpop.permute.xlu0 %856
  %859 = vst.msk [vmem:[#allocation3] sm:$0xff] %vm25, %v857
  // Predicated region
  $region14: #{lstm_forward.6} parent=0 // pred_check
    _
  $region15: #{lstm_forward.6} parent=0 // pred_check_branch
    %861 = sbr.rel (0) target = $region17
  $region16: #{lstm_forward.6} parent=0 // pred_region
    _
  $region17: #{lstm_forward.6} parent=0 // pred_fallthru
    _
  // Predicated region
  $region18: #{lstm_forward.6} parent=0 // pred_check
    _
  $region19: #{lstm_forward.6} parent=0 // pred_check_branch
    %863 = sbr.rel (0) target = $region21
  $region20: #{lstm_forward.6} parent=0 // pred_region
    _
  $region21: #{lstm_forward.6} parent=0 // pred_fallthru
    _

// kernel: lstm_forward.5
$region0: #{lstm_forward.5}
  #allocation0 [shape = 'u32[]', space=smem, size = 0x4, offset = 0x4, fixed_abs, tag = 'smem constant byte address 0x4 - core index']
  #allocation1 [shape = 'u32[144,128]{1,0:T(1,128)}', space=vmem, size = 0x12000, scoped, tag = 'internal scratch']
  %s0 = inlined_call_operand.vmem [shape: f32[64,16], index: 0, kind: input, shape index: {}]
  %s1 = inlined_call_operand.vmem [shape: f32[16,128], index: 1, kind: input, shape index: {}]
  %s2 = inlined_call_operand.vmem [shape: f32[1,128], index: 2, kind: input, shape index: {}]
  %s3 = inlined_call_operand.vmem [shape: f32[64,128], index: 3, kind: output, shape index: {}]
  %s4 = sld [smem:[#allocation0]]
  $region22: #{lstm_forward.5} parent=0
    _
  %s6 = ssub.s32 1, %s4
  %s7 = scalar_select 0, %s6, %s4
  // Predicated region
  $region2: #{lstm_forward.5} parent=0 // pred_check
    _
  $region3: #{lstm_forward.5} parent=0 // pred_check_branch
    %9 = sbr.rel (0) target = $region5
  $region4: #{lstm_forward.5} parent=0 // pred_region
    _
  $region5: #{lstm_forward.5} parent=0 // pred_fallthru
    _
  // Predicated region
  $region6: #{lstm_forward.5} parent=0 // pred_check
    _
  $region7: #{lstm_forward.5} parent=0 // pred_check_branch
    %11 = sbr.rel (0) target = $region9
  $region8: #{lstm_forward.5} parent=0 // pred_region
    _
  $region9: #{lstm_forward.5} parent=0 // pred_fallthru
    _
  // Predicated region
  $region10: #{lstm_forward.5} parent=0 // pred_check
    _
  $region11: #{lstm_forward.5} parent=0 // pred_check_branch
    %13 = sbr.rel (0) target = $region13
  $region12: #{lstm_forward.5} parent=0 // pred_region
    _
  $region13: #{lstm_forward.5} parent=0 // pred_fallthru
    _
  %v14 = vld [vmem:[%s0] sm:$0xff]
  %v15 = vld [vmem:[%s0 + $0x8] sm:$0xff]
  %v16 = vld [vmem:[%s0 + $0x10] sm:$0xff]
  %v17 = vld [vmem:[%s0 + $0x18] sm:$0xff]
  %v18 = vld [vmem:[%s0 + $0x20] sm:$0xff]
  %v19 = vld [vmem:[%s0 + $0x28] sm:$0xff]
  %v20 = vld [vmem:[%s0 + $0x30] sm:$0xff]
  %v21 = vld [vmem:[%s0 + $0x38] sm:$0xff]
  %v22 = vld [vmem:[%s1] sm:$0xff]
  %v23 = vld [vmem:[%s1 + $0x8] sm:$0xff]
  %v24 = vld [vmem:[%s2] sm:$0x1]
  %v26 = vlaneseq
  %v27 = vshrl.u32 %v26, 7
  %v28 = vsub.s32 0, %v27
  %v29 = vrot.slane %v24, %v28
  %vm31 = vcmask 130048
  %v33 = vsel %vm31, %v14, 0
  %v36 = vsel %vm31, %v15, 0
  %v39 = vsel %vm31, %v16, 0
  %v42 = vsel %vm31, %v17, 0
  %v45 = vsel %vm31, %v18, 0
  %v48 = vsel %vm31, %v19, 0
  %v51 = vsel %vm31, %v20, 0
  %v54 = vsel %vm31, %v21, 0
  %56 = vmatprep.subr.mxu0 0.0
  %57 = vmatpush1.msra.mxu0 %v22
  %58 = vmatprep.subr.mxu0 0.0
  %59 = vmatpush1.msra.mxu0 %v23
  %60 = vmatprep.subr.mxu0 0.0
  %61 = vmatpush1.msra.mxu0 0.0
  %62 = vmatprep.subr.mxu0 0.0
  %63 = vmatpush1.msra.mxu0 0.0
  %64 = vmatprep.subr.mxu0 0.0
  %65 = vmatpush1.msra.mxu0 0.0
  %66 = vmatprep.subr.mxu0 0.0
  %67 = vmatpush1.msra.mxu0 0.0
  %68 = vmatprep.subr.mxu0 0.0
  %69 = vmatpush1.msra.mxu0 0.0
  %70 = vmatprep.subr.mxu0 0.0
  %71 = vmatpush1.msra.mxu0 0.0
  %72 = vmatprep.subr.mxu0 0.0
  %73 = vmatpush1.msra.mxu0 0.0
  %74 = vmatprep.subr.mxu0 0.0
  %75 = vmatpush1.msra.mxu0 0.0
  %76 = vmatprep.subr.mxu0 0.0
  %77 = vmatpush1.msra.mxu0 0.0
  %78 = vmatprep.subr.mxu0 0.0
  %79 = vmatpush1.msra.mxu0 0.0
  %80 = vmatprep.subr.mxu0 0.0
  %81 = vmatpush1.msra.mxu0 0.0
  %82 = vmatprep.subr.mxu0 0.0
  %83 = vmatpush1.msra.mxu0 0.0
  %84 = vmatprep.subr.mxu0 0.0
  %85 = vmatpush1.msra.mxu0 0.0
  %86 = vmatprep.subr.mxu0 0.0
  %87 = vmatpush1.msra.mxu0 0.0
  %88 = vmatprep.subr.mxu0 0.0
  %89 = vmatpush1.msra.mxu0 0.0
  %90 = vmatprep.subr.mxu0 0.0
  %91 = vmatpush1.msra.mxu0 0.0
  %92 = vmatprep.subr.mxu0 0.0
  %93 = vmatpush1.msra.mxu0 0.0
  %94 = vmatprep.subr.mxu0 0.0
  %95 = vmatpush1.msra.mxu0 0.0
  %96 = vmatprep.subr.mxu0 0.0
  %97 = vmatpush1.msra.mxu0 0.0
  %98 = vmatprep.subr.mxu0 0.0
  %99 = vmatpush1.msra.mxu0 0.0
  %100 = vmatprep.subr.mxu0 0.0
  %101 = vmatpush1.msra.mxu0 0.0
  %102 = vmatprep.subr.mxu0 0.0
  %103 = vmatpush1.msra.mxu0 0.0
  %104 = vmatprep.subr.mxu0 0.0
  %105 = vmatpush1.msra.mxu0 0.0
  %106 = vmatprep.subr.mxu0 0.0
  %107 = vmatpush1.msra.mxu0 0.0
  %108 = vmatprep.subr.mxu0 0.0
  %109 = vmatpush1.msra.mxu0 0.0
  %110 = vmatprep.subr.mxu0 0.0
  %111 = vmatpush1.msra.mxu0 0.0
  %112 = vmatprep.subr.mxu0 0.0
  %113 = vmatpush1.msra.mxu0 0.0
  %114 = vmatprep.subr.mxu0 0.0
  %115 = vmatpush1.msra.mxu0 0.0
  %116 = vmatprep.subr.mxu0 0.0
  %117 = vmatpush1.msra.mxu0 0.0
  %118 = vmatprep.subr.mxu0 0.0
  %119 = vmatpush1.msra.mxu0 0.0
  %120 = vmatprep.mubr.f32.mxu0 0.0
  %121 = vmatmul.mubr.f32.gmra.mrb[0].mxu0 %v33
  %v122 = vpop.f32.mrb[0].mxu0
  %v123 = vadd.f32 %v29, %v122
  %v124 = vpop.f32.mrb[0].mxu0
  %125 = vmatprep.mubr.f32.mxu0 0.0
  %126 = vmatmul.mubr.f32.gmra.mrb[0].mxu0 %v36
  %v127 = vpop.f32.mrb[0].mxu0
  %v128 = vadd.f32 %v29, %v127
  %v129 = vpop.f32.mrb[0].mxu0
  %130 = vmatprep.mubr.f32.mxu0 0.0
  %131 = vmatmul.mubr.f32.gmra.mrb[0].mxu0 %v39
  %v132 = vpop.f32.mrb[0].mxu0
  %v133 = vadd.f32 %v29, %v132
  %v134 = vpop.f32.mrb[0].mxu0
  %135 = vmatprep.mubr.f32.mxu0 0.0
  %136 = vmatmul.mubr.f32.gmra.mrb[0].mxu0 %v42
  %v137 = vpop.f32.mrb[0].mxu0
  %v138 = vadd.f32 %v29, %v137
  %v139 = vpop.f32.mrb[0].mxu0
  %140 = vmatprep.mubr.f32.mxu0 0.0
  %141 = vmatmul.mubr.f32.gmra.mrb[0].mxu0 %v45
  %v142 = vpop.f32.mrb[0].mxu0
  %v143 = vadd.f32 %v29, %v142
  %v144 = vpop.f32.mrb[0].mxu0
  %145 = vmatprep.mubr.f32.mxu0 0.0
  %146 = vmatmul.mubr.f32.gmra.mrb[0].mxu0 %v48
  %v147 = vpop.f32.mrb[0].mxu0
  %v148 = vadd.f32 %v29, %v147
  %v149 = vpop.f32.mrb[0].mxu0
  %150 = vmatprep.mubr.f32.mxu0 0.0
  %151 = vmatmul.mubr.f32.gmra.mrb[0].mxu0 %v51
  %v152 = vpop.f32.mrb[0].mxu0
  %v153 = vadd.f32 %v29, %v152
  %v154 = vpop.f32.mrb[0].mxu0
  %155 = vmatprep.mubr.f32.mxu0 0.0
  %156 = vmatmul.mubr.f32.gmra.mrb[0].mxu0 %v54
  %v157 = vpop.f32.mrb[0].mxu0
  %v158 = vadd.f32 %v29, %v157
  %v159 = vpop.f32.mrb[0].mxu0
  %160 = vdwg.mxu0
  %161 = vst [vmem:[%s3] sm:$0xff] %v123
  %162 = vst [vmem:[%s3 + $0x8] sm:$0xff] %v128
  %163 = vst [vmem:[%s3 + $0x10] sm:$0xff] %v133
  %164 = vst [vmem:[%s3 + $0x18] sm:$0xff] %v138
  %165 = vst [vmem:[%s3 + $0x20] sm:$0xff] %v143
  %166 = vst [vmem:[%s3 + $0x28] sm:$0xff] %v148
  %167 = vst [vmem:[%s3 + $0x30] sm:$0xff] %v153
  %168 = vst [vmem:[%s3 + $0x38] sm:$0xff] %v158
  // Predicated region
  $region14: #{lstm_forward.5} parent=0 // pred_check
    _
  $region15: #{lstm_forward.5} parent=0 // pred_check_branch
    %170 = sbr.rel (0) target = $region17
  $region16: #{lstm_forward.5} parent=0 // pred_region
    _
  $region17: #{lstm_forward.5} parent=0 // pred_fallthru
    _
  // Predicated region
  $region18: #{lstm_forward.5} parent=0 // pred_check
    _
  $region19: #{lstm_forward.5} parent=0 // pred_check_branch
    %172 = sbr.rel (0) target = $region21
  $region20: #{lstm_forward.5} parent=0 // pred_region
    _
  $region21: #{lstm_forward.5} parent=0 // pred_fallthru
    _

// kernel: lstm_forward.7
$region0: #{lstm_forward.7}
  #allocation0 [shape = 'u32[]', space=smem, size = 0x4, offset = 0x4, fixed_abs, tag = 'smem constant byte address 0x4 - core index']
  #allocation1 [shape = 'u32[144,128]{1,0:T(1,128)}', space=vmem, size = 0x12000, scoped, tag = 'internal scratch']
  %s0 = inlined_call_operand.vmem [shape: f32[64,32], index: 0, kind: input, shape index: {}]
  %s1 = inlined_call_operand.vmem [shape: f32[32,128], index: 1, kind: input, shape index: {}]
  %s2 = inlined_call_operand.vmem [shape: f32[1,128], index: 2, kind: input, shape index: {}]
  %s3 = inlined_call_operand.vmem [shape: f32[64,128], index: 3, kind: output, shape index: {}]
  %s4 = sld [smem:[#allocation0]]
  $region22: #{lstm_forward.7} parent=0
    _
  %s6 = ssub.s32 1, %s4
  %s7 = scalar_select 0, %s6, %s4
  // Predicated region
  $region2: #{lstm_forward.7} parent=0 // pred_check
    _
  $region3: #{lstm_forward.7} parent=0 // pred_check_branch
    %9 = sbr.rel (0) target = $region5
  $region4: #{lstm_forward.7} parent=0 // pred_region
    _
  $region5: #{lstm_forward.7} parent=0 // pred_fallthru
    _
  // Predicated region
  $region6: #{lstm_forward.7} parent=0 // pred_check
    _
  $region7: #{lstm_forward.7} parent=0 // pred_check_branch
    %11 = sbr.rel (0) target = $region9
  $region8: #{lstm_forward.7} parent=0 // pred_region
    _
  $region9: #{lstm_forward.7} parent=0 // pred_fallthru
    _
  // Predicated region
  $region10: #{lstm_forward.7} parent=0 // pred_check
    _
  $region11: #{lstm_forward.7} parent=0 // pred_check_branch
    %13 = sbr.rel (0) target = $region13
  $region12: #{lstm_forward.7} parent=0 // pred_region
    _
  $region13: #{lstm_forward.7} parent=0 // pred_fallthru
    _
  %v14 = vld [vmem:[%s0] sm:$0xff]
  %v15 = vld [vmem:[%s0 + $0x8] sm:$0xff]
  %v16 = vld [vmem:[%s0 + $0x10] sm:$0xff]
  %v17 = vld [vmem:[%s0 + $0x18] sm:$0xff]
  %v18 = vld [vmem:[%s0 + $0x20] sm:$0xff]
  %v19 = vld [vmem:[%s0 + $0x28] sm:$0xff]
  %v20 = vld [vmem:[%s0 + $0x30] sm:$0xff]
  %v21 = vld [vmem:[%s0 + $0x38] sm:$0xff]
  %v22 = vld [vmem:[%s1] sm:$0xff]
  %v23 = vld [vmem:[%s1 + $0x8] sm:$0xff]
  %v24 = vld [vmem:[%s1 + $0x10] sm:$0xff]
  %v25 = vld [vmem:[%s1 + $0x18] sm:$0xff]
  %v26 = vld [vmem:[%s2] sm:$0x1]
  %v28 = vlaneseq
  %v29 = vshrl.u32 %v28, 7
  %v30 = vsub.s32 0, %v29
  %v31 = vrot.slane %v26, %v30
  %vm33 = vcmask 261120
  %v35 = vsel %vm33, %v14, 0
  %v38 = vsel %vm33, %v15, 0
  %v41 = vsel %vm33, %v16, 0
  %v44 = vsel %vm33, %v17, 0
  %v47 = vsel %vm33, %v18, 0
  %v50 = vsel %vm33, %v19, 0
  %v53 = vsel %vm33, %v20, 0
  %v56 = vsel %vm33, %v21, 0
  %58 = vmatprep.subr.mxu0 0.0
  %59 = vmatpush1.msra.mxu0 %v22
  %60 = vmatprep.subr.mxu0 0.0
  %61 = vmatpush1.msra.mxu0 %v23
  %62 = vmatprep.subr.mxu0 0.0
  %63 = vmatpush1.msra.mxu0 %v24
  %64 = vmatprep.subr.mxu0 0.0
  %65 = vmatpush1.msra.mxu0 %v25
  %66 = vmatprep.subr.mxu0 0.0
  %67 = vmatpush1.msra.mxu0 0.0
  %68 = vmatprep.subr.mxu0 0.0
  %69 = vmatpush1.msra.mxu0 0.0
  %70 = vmatprep.subr.mxu0 0.0
  %71 = vmatpush1.msra.mxu0 0.0
  %72 = vmatprep.subr.mxu0 0.0
  %73 = vmatpush1.msra.mxu0 0.0
  %74 = vmatprep.subr.mxu0 0.0
  %75 = vmatpush1.msra.mxu0 0.0
  %76 = vmatprep.subr.mxu0 0.0
  %77 = vmatpush1.msra.mxu0 0.0
  %78 = vmatprep.subr.mxu0 0.0
  %79 = vmatpush1.msra.mxu0 0.0
  %80 = vmatprep.subr.mxu0 0.0
  %81 = vmatpush1.msra.mxu0 0.0
  %82 = vmatprep.subr.mxu0 0.0
  %83 = vmatpush1.msra.mxu0 0.0
  %84 = vmatprep.subr.mxu0 0.0
  %85 = vmatpush1.msra.mxu0 0.0
  %86 = vmatprep.subr.mxu0 0.0
  %87 = vmatpush1.msra.mxu0 0.0
  %88 = vmatprep.subr.mxu0 0.0
  %89 = vmatpush1.msra.mxu0 0.0
  %90 = vmatprep.subr.mxu0 0.0
  %91 = vmatpush1.msra.mxu0 0.0
  %92 = vmatprep.subr.mxu0 0.0
  %93 = vmatpush1.msra.mxu0 0.0
  %94 = vmatprep.subr.mxu0 0.0
  %95 = vmatpush1.msra.mxu0 0.0
  %96 = vmatprep.subr.mxu0 0.0
  %97 = vmatpush1.msra.mxu0 0.0
  %98 = vmatprep.subr.mxu0 0.0
  %99 = vmatpush1.msra.mxu0 0.0
  %100 = vmatprep.subr.mxu0 0.0
  %101 = vmatpush1.msra.mxu0 0.0
  %102 = vmatprep.subr.mxu0 0.0
  %103 = vmatpush1.msra.mxu0 0.0
  %104 = vmatprep.subr.mxu0 0.0
  %105 = vmatpush1.msra.mxu0 0.0
  %106 = vmatprep.subr.mxu0 0.0
  %107 = vmatpush1.msra.mxu0 0.0
  %108 = vmatprep.subr.mxu0 0.0
  %109 = vmatpush1.msra.mxu0 0.0
  %110 = vmatprep.subr.mxu0 0.0
  %111 = vmatpush1.msra.mxu0 0.0
  %112 = vmatprep.subr.mxu0 0.0
  %113 = vmatpush1.msra.mxu0 0.0
  %114 = vmatprep.subr.mxu0 0.0
  %115 = vmatpush1.msra.mxu0 0.0
  %116 = vmatprep.subr.mxu0 0.0
  %117 = vmatpush1.msra.mxu0 0.0
  %118 = vmatprep.subr.mxu0 0.0
  %119 = vmatpush1.msra.mxu0 0.0
  %120 = vmatprep.subr.mxu0 0.0
  %121 = vmatpush1.msra.mxu0 0.0
  %122 = vmatprep.mubr.f32.mxu0 0.0
  %123 = vmatmul.mubr.f32.gmra.mrb[0].mxu0 %v35
  %v124 = vpop.f32.mrb[0].mxu0
  %v125 = vadd.f32 %v31, %v124
  %v126 = vpop.f32.mrb[0].mxu0
  %127 = vmatprep.mubr.f32.mxu0 0.0
  %128 = vmatmul.mubr.f32.gmra.mrb[0].mxu0 %v38
  %v129 = vpop.f32.mrb[0].mxu0
  %v130 = vadd.f32 %v31, %v129
  %v131 = vpop.f32.mrb[0].mxu0
  %132 = vmatprep.mubr.f32.mxu0 0.0
  %133 = vmatmul.mubr.f32.gmra.mrb[0].mxu0 %v41
  %v134 = vpop.f32.mrb[0].mxu0
  %v135 = vadd.f32 %v31, %v134
  %v136 = vpop.f32.mrb[0].mxu0
  %137 = vmatprep.mubr.f32.mxu0 0.0
  %138 = vmatmul.mubr.f32.gmra.mrb[0].mxu0 %v44
  %v139 = vpop.f32.mrb[0].mxu0
  %v140 = vadd.f32 %v31, %v139
  %v141 = vpop.f32.mrb[0].mxu0
  %142 = vmatprep.mubr.f32.mxu0 0.0
  %143 = vmatmul.mubr.f32.gmra.mrb[0].mxu0 %v47
  %v144 = vpop.f32.mrb[0].mxu0
  %v145 = vadd.f32 %v31, %v144
  %v146 = vpop.f32.mrb[0].mxu0
  %147 = vmatprep.mubr.f32.mxu0 0.0
  %148 = vmatmul.mubr.f32.gmra.mrb[0].mxu0 %v50
  %v149 = vpop.f32.mrb[0].mxu0
  %v150 = vadd.f32 %v31, %v149
  %v151 = vpop.f32.mrb[0].mxu0
  %152 = vmatprep.mubr.f32.mxu0 0.0
  %153 = vmatmul.mubr.f32.gmra.mrb[0].mxu0 %v53
  %v154 = vpop.f32.mrb[0].mxu0
  %v155 = vadd.f32 %v31, %v154
  %v156 = vpop.f32.mrb[0].mxu0
  %157 = vmatprep.mubr.f32.mxu0 0.0
  %158 = vmatmul.mubr.f32.gmra.mrb[0].mxu0 %v56
  %v159 = vpop.f32.mrb[0].mxu0
  %v160 = vadd.f32 %v31, %v159
  %v161 = vpop.f32.mrb[0].mxu0
  %162 = vdwg.mxu0
  %163 = vst [vmem:[%s3] sm:$0xff] %v125
  %164 = vst [vmem:[%s3 + $0x8] sm:$0xff] %v130
  %165 = vst [vmem:[%s3 + $0x10] sm:$0xff] %v135
  %166 = vst [vmem:[%s3 + $0x18] sm:$0xff] %v140
  %167 = vst [vmem:[%s3 + $0x20] sm:$0xff] %v145
  %168 = vst [vmem:[%s3 + $0x28] sm:$0xff] %v150
  %169 = vst [vmem:[%s3 + $0x30] sm:$0xff] %v155
  %170 = vst [vmem:[%s3 + $0x38] sm:$0xff] %v160
  // Predicated region
  $region14: #{lstm_forward.7} parent=0 // pred_check
    _
  $region15: #{lstm_forward.7} parent=0 // pred_check_branch
    %172 = sbr.rel (0) target = $region17
  $region16: #{lstm_forward.7} parent=0 // pred_region
    _
  $region17: #{lstm_forward.7} parent=0 // pred_fallthru
    _
  // Predicated region
  $region18: #{lstm_forward.7} parent=0 // pred_check
    _
  $region19: #{lstm_forward.7} parent=0 // pred_check_branch
    %174 = sbr.rel (0) target = $region21
  $region20: #{lstm_forward.7} parent=0 // pred_region
    _
  $region21: #{lstm_forward.7} parent=0 // pred_fallthru
    _

// kernel: lstm_forward.9
$region0: #{lstm_forward.9}
  #allocation0 [shape = 'u32[]', space=smem, size = 0x4, offset = 0x4, fixed_abs, tag = 'smem constant byte address 0x4 - core index']
  #allocation1 [shape = 'u32[144,128]{1,0:T(1,128)}', space=vmem, size = 0x12000, scoped, tag = 'internal scratch']
  %s0 = inlined_call_operand.vmem [shape: f32[8,32], index: 0, kind: input, shape index: {}]
  %s1 = inlined_call_operand.vmem [shape: f32[32,128], index: 1, kind: input, shape index: {}]
  %s2 = inlined_call_operand.vmem [shape: f32[1,128], index: 2, kind: input, shape index: {}]
  %s3 = inlined_call_operand.vmem [shape: f32[128,128], index: 3, kind: input, shape index: {}]
  %s4 = inlined_call_operand.vmem [shape: f32[1,128], index: 4, kind: input, shape index: {}]
  %s5 = inlined_call_operand.vmem [shape: f32[8,128], index: 5, kind: output, shape index: {}]
  %s6 = sld [smem:[#allocation0]]
  $region30: #{lstm_forward.9} parent=0
    _
  %s8 = ssub.s32 1, %s6
  %s9 = scalar_select 0, %s8, %s6
  // Predicated region
  $region2: #{lstm_forward.9} parent=0 // pred_check
    _
  $region3: #{lstm_forward.9} parent=0 // pred_check_branch
    %11 = sbr.rel (0) target = $region5
  $region4: #{lstm_forward.9} parent=0 // pred_region
    _
  $region5: #{lstm_forward.9} parent=0 // pred_fallthru
    _
  // Predicated region
  $region6: #{lstm_forward.9} parent=0 // pred_check
    _
  $region7: #{lstm_forward.9} parent=0 // pred_check_branch
    %13 = sbr.rel (0) target = $region9
  $region8: #{lstm_forward.9} parent=0 // pred_region
    _
  $region9: #{lstm_forward.9} parent=0 // pred_fallthru
    _
  // Predicated region
  $region10: #{lstm_forward.9} parent=0 // pred_check
    _
  $region11: #{lstm_forward.9} parent=0 // pred_check_branch
    %15 = sbr.rel (0) target = $region13
  $region12: #{lstm_forward.9} parent=0 // pred_region
    _
  $region13: #{lstm_forward.9} parent=0 // pred_fallthru
    _
  // Predicated region
  $region14: #{lstm_forward.9} parent=0 // pred_check
    _
  $region15: #{lstm_forward.9} parent=0 // pred_check_branch
    %17 = sbr.rel (0) target = $region17
  $region16: #{lstm_forward.9} parent=0 // pred_region
    _
  $region17: #{lstm_forward.9} parent=0 // pred_fallthru
    _
  // Predicated region
  $region18: #{lstm_forward.9} parent=0 // pred_check
    _
  $region19: #{lstm_forward.9} parent=0 // pred_check_branch
    %19 = sbr.rel (0) target = $region21
  $region20: #{lstm_forward.9} parent=0 // pred_region
    _
  $region21: #{lstm_forward.9} parent=0 // pred_fallthru
    _
  %v20 = vld [vmem:[%s0] sm:$0xff]
  %v21 = vld [vmem:[%s1] sm:$0xff]
  %v22 = vld [vmem:[%s1 + $0x8] sm:$0xff]
  %v23 = vld [vmem:[%s1 + $0x10] sm:$0xff]
  %v24 = vld [vmem:[%s1 + $0x18] sm:$0xff]
  %v25 = vld [vmem:[%s2] sm:$0x1]
  %v27 = vlaneseq
  %v28 = vshrl.u32 %v27, 7
  %v29 = vsub.s32 0, %v28
  %v30 = vrot.slane %v25, %v29
  %vm32 = vcmask 261120
  %v34 = vsel %vm32, %v20, 0
  %36 = vmatprep.subr.mxu0 0.0
  %37 = vmatpush1.msra.mxu0 %v21
  %38 = vmatprep.subr.mxu0 0.0
  %39 = vmatpush1.msra.mxu0 %v22
  %40 = vmatprep.subr.mxu0 0.0
  %41 = vmatpush1.msra.mxu0 %v23
  %42 = vmatprep.subr.mxu0 0.0
  %43 = vmatpush1.msra.mxu0 %v24
  %44 = vmatprep.subr.mxu0 0.0
  %45 = vmatpush1.msra.mxu0 0.0
  %46 = vmatprep.subr.mxu0 0.0
  %47 = vmatpush1.msra.mxu0 0.0
  %48 = vmatprep.subr.mxu0 0.0
  %49 = vmatpush1.msra.mxu0 0.0
  %50 = vmatprep.subr.mxu0 0.0
  %51 = vmatpush1.msra.mxu0 0.0
  %52 = vmatprep.subr.mxu0 0.0
  %53 = vmatpush1.msra.mxu0 0.0
  %54 = vmatprep.subr.mxu0 0.0
  %55 = vmatpush1.msra.mxu0 0.0
  %56 = vmatprep.subr.mxu0 0.0
  %57 = vmatpush1.msra.mxu0 0.0
  %58 = vmatprep.subr.mxu0 0.0
  %59 = vmatpush1.msra.mxu0 0.0
  %60 = vmatprep.subr.mxu0 0.0
  %61 = vmatpush1.msra.mxu0 0.0
  %62 = vmatprep.subr.mxu0 0.0
  %63 = vmatpush1.msra.mxu0 0.0
  %64 = vmatprep.subr.mxu0 0.0
  %65 = vmatpush1.msra.mxu0 0.0
  %66 = vmatprep.subr.mxu0 0.0
  %67 = vmatpush1.msra.mxu0 0.0
  %68 = vmatprep.subr.mxu0 0.0
  %69 = vmatpush1.msra.mxu0 0.0
  %70 = vmatprep.subr.mxu0 0.0
  %71 = vmatpush1.msra.mxu0 0.0
  %72 = vmatprep.subr.mxu0 0.0
  %73 = vmatpush1.msra.mxu0 0.0
  %74 = vmatprep.subr.mxu0 0.0
  %75 = vmatpush1.msra.mxu0 0.0
  %76 = vmatprep.subr.mxu0 0.0
  %77 = vmatpush1.msra.mxu0 0.0
  %78 = vmatprep.subr.mxu0 0.0
  %79 = vmatpush1.msra.mxu0 0.0
  %80 = vmatprep.subr.mxu0 0.0
  %81 = vmatpush1.msra.mxu0 0.0
  %82 = vmatprep.subr.mxu0 0.0
  %83 = vmatpush1.msra.mxu0 0.0
  %84 = vmatprep.subr.mxu0 0.0
  %85 = vmatpush1.msra.mxu0 0.0
  %86 = vmatprep.subr.mxu0 0.0
  %87 = vmatpush1.msra.mxu0 0.0
  %88 = vmatprep.subr.mxu0 0.0
  %89 = vmatpush1.msra.mxu0 0.0
  %90 = vmatprep.subr.mxu0 0.0
  %91 = vmatpush1.msra.mxu0 0.0
  %92 = vmatprep.subr.mxu0 0.0
  %93 = vmatpush1.msra.mxu0 0.0
  %94 = vmatprep.subr.mxu0 0.0
  %95 = vmatpush1.msra.mxu0 0.0
  %96 = vmatprep.subr.mxu0 0.0
  %97 = vmatpush1.msra.mxu0 0.0
  %98 = vmatprep.subr.mxu0 0.0
  %99 = vmatpush1.msra.mxu0 0.0
  %100 = vmatprep.mubr.f32.mxu0 0.0
  %101 = vmatmul.mubr.f32.gmra.mrb[0].mxu0 %v34
  %v102 = vpop.f32.mrb[0].mxu0
  %v103 = vadd.f32 %v30, %v102
  %v104 = vpop.f32.mrb[0].mxu0
  %105 = vdwg.mxu0
  %v106 = vmax.f32 %v103, 0.0
  %v107 = vld [vmem:[%s3] sm:$0xff]
  %v108 = vld [vmem:[%s3 + $0x8] sm:$0xff]
  %v109 = vld [vmem:[%s3 + $0x10] sm:$0xff]
  %v110 = vld [vmem:[%s3 + $0x18] sm:$0xff]
  %v111 = vld [vmem:[%s3 + $0x20] sm:$0xff]
  %v112 = vld [vmem:[%s3 + $0x28] sm:$0xff]
  %v113 = vld [vmem:[%s3 + $0x30] sm:$0xff]
  %v114 = vld [vmem:[%s3 + $0x38] sm:$0xff]
  %v115 = vld [vmem:[%s3 + $0x40] sm:$0xff]
  %v116 = vld [vmem:[%s3 + $0x48] sm:$0xff]
  %v117 = vld [vmem:[%s3 + $0x50] sm:$0xff]
  %v118 = vld [vmem:[%s3 + $0x58] sm:$0xff]
  %v119 = vld [vmem:[%s3 + $0x60] sm:$0xff]
  %v120 = vld [vmem:[%s3 + $0x68] sm:$0xff]
  %v121 = vld [vmem:[%s3 + $0x70] sm:$0xff]
  %v122 = vld [vmem:[%s3 + $0x78] sm:$0xff]
  %v123 = vld [vmem:[%s4] sm:$0x1]
  %v125 = vlaneseq
  %v126 = vshrl.u32 %v125, 7
  %v127 = vsub.s32 0, %v126
  %v128 = vrot.slane %v123, %v127
  %130 = vmatprep.subr.mxu0 0.0
  %131 = vmatpush1.msra.mxu0 %v107
  %132 = vmatprep.subr.mxu0 0.0
  %133 = vmatpush1.msra.mxu0 %v108
  %134 = vmatprep.subr.mxu0 0.0
  %135 = vmatpush1.msra.mxu0 %v109
  %136 = vmatprep.subr.mxu0 0.0
  %137 = vmatpush1.msra.mxu0 %v110
  %138 = vmatprep.subr.mxu0 0.0
  %139 = vmatpush1.msra.mxu0 %v111
  %140 = vmatprep.subr.mxu0 0.0
  %141 = vmatpush1.msra.mxu0 %v112
  %142 = vmatprep.subr.mxu0 0.0
  %143 = vmatpush1.msra.mxu0 %v113
  %144 = vmatprep.subr.mxu0 0.0
  %145 = vmatpush1.msra.mxu0 %v114
  %146 = vmatprep.subr.mxu0 0.0
  %147 = vmatpush1.msra.mxu0 %v115
  %148 = vmatprep.subr.mxu0 0.0
  %149 = vmatpush1.msra.mxu0 %v116
  %150 = vmatprep.subr.mxu0 0.0
  %151 = vmatpush1.msra.mxu0 %v117
  %152 = vmatprep.subr.mxu0 0.0
  %153 = vmatpush1.msra.mxu0 %v118
  %154 = vmatprep.subr.mxu0 0.0
  %155 = vmatpush1.msra.mxu0 %v119
  %156 = vmatprep.subr.mxu0 0.0
  %157 = vmatpush1.msra.mxu0 %v120
  %158 = vmatprep.subr.mxu0 0.0
  %159 = vmatpush1.msra.mxu0 %v121
  %160 = vmatprep.subr.mxu0 0.0
  %161 = vmatpush1.msra.mxu0 %v122
  %162 = vmatprep.subr.mxu0 0.0
  %163 = vmatpush1.msra.mxu0 0.0
  %164 = vmatprep.subr.mxu0 0.0
  %165 = vmatpush1.msra.mxu0 0.0
  %166 = vmatprep.subr.mxu0 0.0
  %167 = vmatpush1.msra.mxu0 0.0
  %168 = vmatprep.subr.mxu0 0.0
  %169 = vmatpush1.msra.mxu0 0.0
  %170 = vmatprep.subr.mxu0 0.0
  %171 = vmatpush1.msra.mxu0 0.0
  %172 = vmatprep.subr.mxu0 0.0
  %173 = vmatpush1.msra.mxu0 0.0
  %174 = vmatprep.subr.mxu0 0.0
  %175 = vmatpush1.msra.mxu0 0.0
  %176 = vmatprep.subr.mxu0 0.0
  %177 = vmatpush1.msra.mxu0 0.0
  %178 = vmatprep.subr.mxu0 0.0
  %179 = vmatpush1.msra.mxu0 0.0
  %180 = vmatprep.subr.mxu0 0.0
  %181 = vmatpush1.msra.mxu0 0.0
  %182 = vmatprep.subr.mxu0 0.0
  %183 = vmatpush1.msra.mxu0 0.0
  %184 = vmatprep.subr.mxu0 0.0
  %185 = vmatpush1.msra.mxu0 0.0
  %186 = vmatprep.subr.mxu0 0.0
  %187 = vmatpush1.msra.mxu0 0.0
  %188 = vmatprep.subr.mxu0 0.0
  %189 = vmatpush1.msra.mxu0 0.0
  %190 = vmatprep.subr.mxu0 0.0
  %191 = vmatpush1.msra.mxu0 0.0
  %192 = vmatprep.subr.mxu0 0.0
  %193 = vmatpush1.msra.mxu0 0.0
  %194 = vmatprep.mubr.f32.mxu0 0.0
  %195 = vmatmul.mubr.f32.gmra.mrb[0].mxu0 %v106
  %v196 = vpop.f32.mrb[0].mxu0
  %v197 = vadd.f32 %v128, %v196
  %v198 = vpop.f32.mrb[0].mxu0
  %199 = vdwg.mxu0
  %200 = vst [vmem:[%s5] sm:$0xff] %v197
  // Predicated region
  $region22: #{lstm_forward.9} parent=0 // pred_check
    _
  $region23: #{lstm_forward.9} parent=0 // pred_check_branch
    %202 = sbr.rel (0) target = $region25
  $region24: #{lstm_forward.9} parent=0 // pred_region
    _
  $region25: #{lstm_forward.9} parent=0 // pred_fallthru
    _
  // Predicated region
  $region26: #{lstm_forward.9} parent=0 // pred_check
    _
  $region27: #{lstm_forward.9} parent=0 // pred_check_branch
    %204 = sbr.rel (0) target = $region29
  $region28: #{lstm_forward.9} parent=0 // pred_region
    _
  $region29: #{lstm_forward.9} parent=0 // pred_fallthru
    _

</llo_original>
